<compile_context>
chip_gen: v6e
topology: v6e:2x2x1
jax: 0.10.0
libtpu: 0.0.40
codegen_flags: <defaults>
</compile_context>

<pallas_src>
import math
import functools

import jax
import jax.numpy as jnp
from jax.experimental import pallas as pl
from jax.experimental.pallas import tpu as pltpu


def _round_up(x, n):
    return ((x + n - 1) // n) * n


def _gfft_kernel(x_ref, b_ref, out_ref):
    # x_ref  : (TM, input_dim)  tile of flattened input rows (native dtype)
    # b_ref  : (input_dim, D)   projection matrix with 2*pi pre-folded (f32)
    # out_ref: (TM, 2*D)        fused [sin | cos] output tile
    x = x_ref[...]
    b = b_ref[...]
    if x.dtype != b.dtype:
        # Only hit for non-f32 inputs (e.g. bf16 x): keep B in f32 for
        # accuracy, up-cast x (tiny vs. the EUP/HBM-bound rest).
        x = x.astype(b.dtype)
    proj = jnp.dot(x, b, preferred_element_type=jnp.float32)

    d = b_ref.shape[1]
    sin = jnp.sin(proj)   # f32 transcendentals (v5e EUP has no bf16 path)
    cos = jnp.cos(proj)
    if d % 128 == 0:
        # Lane-dense case: both halves start on a 128-lane boundary ->
        # two unmasked, full-width stores.
        out_ref[:, :d] = sin.astype(out_ref.dtype)
        out_ref[:, d:] = cos.astype(out_ref.dtype)
    else:
        # Small / unaligned D fallback: build the whole (TM, 2D) tile and
        # issue a single store rather than two misaligned masked half-stores.
        out_ref[...] = jnp.concatenate([sin, cos], axis=-1).astype(out_ref.dtype)
    # TODO(synk): on v7x (EUP-bound) fuse any downstream per-element work
    # (scale/bias/cast for the next layer) here — VPU/store slots have slack.


def _vmem_limit_bytes(default=48 << 20):
    """Scoped-VMEM limit with headroom (v7x has only 64 MiB physical per TC)."""
    try:
        cap = getattr(pltpu.get_tpu_info(), "vmem_capacity_bytes", None)
        if cap:
            return int(min(cap * 3 // 4, 96 << 20))
    except Exception:
        pass
    return int(default)


def _choose_tm(m, input_dim, d, in_bytes, out_bytes, sublane, budget_bytes=24 << 20):
    """Row tile: big, VMEM-safe (lane padding accounted), >=2 grid steps/TC."""
    # Double-buffered x tile + double-buffered out tile; account for the
    # 128-lane padding of both the tiny input_dim and small 2D widths.
    padded_in = _round_up(input_dim, 128) * in_bytes
    padded_out = _round_up(2 * d, 128) * out_bytes
    per_row = 2 * padded_in + 2 * padded_out
    tm = budget_bytes // max(per_row, 1)
    tm = min(tm, 2048)                          # big-tile regime; marginal beyond
    tm = min(tm, _round_up(-(-m // 4), sublane))  # grid >= 4 => >=2 steps per v7x TC
    tm = max(sublane, (tm // sublane) * sublane)  # sublane multiple of out dtype
    return int(tm)


@functools.partial(jax.jit, static_argnames=("tm", "out_dtype"))
def gaussian_fourier_feature_transform(x, B, *, tm=None, out_dtype=None):
    """x: [..., time, input_dim]; B: [input_dim, n_fourier_feats // 2]."""
    *lead, input_dim = x.shape
    d = B.shape[1]
    n_fourier_feats = 2 * d
    out_dtype = jnp.dtype(out_dtype) if out_dtype is not None else x.dtype

    m = 1
    for s in lead:
        m *= s
    x2 = x.reshape(m, input_dim)  # contiguous reshape: no copy

    sublane = {4: 8, 2: 16, 1: 32}.get(out_dtype.itemsize, 8)
    if tm is None:
        tm = _choose_tm(m, input_dim, d, x2.dtype.itemsize,
                        out_dtype.itemsize, sublane)

    # Fold the 2*pi scale into the (tiny) projection matrix once.
    b_scaled = (2.0 * math.pi) * B.astype(jnp.float32)

    grid_m = pl.cdiv(m, tm)  # ragged last block: OOB reads don't-care, writes masked

    cost = pl.CostEstimate(
        flops=2 * m * input_dim * d,
        transcendentals=2 * m * d,
        bytes_accessed=(
            m * input_dim * x2.dtype.itemsize
            + input_dim * d * 4
            + m * n_fourier_feats * out_dtype.itemsize
        ),
    )

    out = pl.pallas_call(
        _gfft_kernel,
        out_shape=jax.ShapeDtypeStruct((m, n_fourier_feats), out_dtype),
        grid_spec=pltpu.PrefetchScalarGridSpec(
            num_scalar_prefetch=0,
            grid=(grid_m,),
            in_specs=[
                pl.BlockSpec((tm, input_dim), lambda i: (i, 0)),
                pl.BlockSpec((input_dim, d), lambda i: (0, 0)),  # resident, fetched once
            ],
            out_specs=pl.BlockSpec((tm, n_fourier_feats), lambda i: (i, 0)),
        ),
        compiler_params=pltpu.CompilerParams(
            dimension_semantics=("parallel",),
            vmem_limit_bytes=_vmem_limit_bytes(),
        ),
        cost_estimate=cost,
    )(x2, b_scaled)

    return out.reshape(*lead, n_fourier_feats)


def make_B(key, input_dim, n_fourier_feats, scales):
    """Deterministic construction matching the PyTorch __init__ buffer shapes."""
    n_scale_feats = n_fourier_feats // (2 * len(scales))
    keys = jax.random.split(key, len(scales))
    parts = [
        jax.random.normal(k, (input_dim, n_scale_feats), dtype=jnp.float32) * float(s)
        for k, s in zip(keys, scales)
    ]
    return jnp.concatenate(parts, axis=1)  # [input_dim, n_fourier_feats // 2]


def _reference_and_tol(x, B):
    """Pure-JAX reference plus a conditioning-aware tolerance.

    sin/cos of large arguments amplify ulp-level differences in the argument
    (2*pi fold order, MXU vs XLA matmul rounding): |d sin(t)| <= |dt| and
    |dt| is a few ulps of max|proj|, so a flat 1e-5 atol is not achievable
    when |proj| reaches a few hundred.
    """
    proj = 2.0 * math.pi * jnp.einsum(
        "...tn,nd->...td",
        x.astype(jnp.float32), B.astype(jnp.float32),
        precision="highest",
    )
    ref = jnp.concatenate([jnp.sin(proj), jnp.cos(proj)], axis=-1)
    max_arg = float(jnp.max(jnp.abs(proj)))
    atol = 1e-5 + 16.0 * float(jnp.finfo(jnp.float32).eps) * max_arg
    return ref, atol


if __name__ == "__main__":
    key = jax.random.PRNGKey(0)
    k_x, k_b, k_x2, k_b2 = jax.random.split(key, 4)

    input_dim = 4
    scales = [1, 10]

    # Primary case: D = n_fourier_feats // 2 = 256 is a multiple of 128, so
    # both sin/cos half-stores are lane-dense (unmasked full-width vst).
    batch, time = 2, 64
    n_fourier_feats = 512
    x = jax.random.normal(k_x, (batch, time, input_dim), dtype=jnp.float32)
    B = make_B(k_b, input_dim, n_fourier_feats, scales)

    out = jax.block_until_ready(gaussian_fourier_feature_transform(x, B))
    ref, atol = _reference_and_tol(x, B)
    assert out.shape == (batch, time, n_fourier_feats), out.shape
    err = float(jnp.max(jnp.abs(out.astype(jnp.float32) - ref)))
    assert err <= atol, (err, atol)

    # Small, ragged case (M = 21 rows not a multiple of the row tile, D = 32
    # below a full lane tile): exercises the masked last-block path and the
    # single-store fallback in the kernel.
    n_ff_small = 64
    x_ragged = jax.random.normal(k_x2, (3, 7, input_dim), dtype=jnp.float32)
    B_small = make_B(k_b2, input_dim, n_ff_small, scales)

    out2 = jax.block_until_ready(gaussian_fourier_feature_transform(x_ragged, B_small))
    ref2, atol2 = _reference_and_tol(x_ragged, B_small)
    assert out2.shape == (3, 7, n_ff_small), out2.shape
    err2 = float(jnp.max(jnp.abs(out2.astype(jnp.float32) - ref2)))
    assert err2 <= atol2, (err2, atol2)

    print("KERNEL_OK")
</pallas_src>

<mosaic_0001>
module attributes {stable_mosaic.version = 11 : i64} {
  func.func @_gfft_kernel(%arg0: i32, %arg1: memref<32x4xf32, #tpu.memory_space<vmem>>, %arg2: memref<4x256xf32, #tpu.memory_space<vmem>>, %arg3: memref<32x512xf32, #tpu.memory_space<vmem>>) attributes {dimension_semantics = [#tpu.dimension_semantics<parallel>], iteration_bounds = array<i64: 4>, scalar_prefetch = 0 : i64, scratch_operands = 0 : i64, tpu.core_type = #tpu.core_type<tc>, window_params = [{transform_indices = @transform_0, window_bounds = array<i64: 32, 4>}, {pipeline_mode = #tpu.pipeline_mode<synchronous>, transform_indices = @transform_1, window_bounds = array<i64: 4, 256>}, {transform_indices = @transform_2, window_bounds = array<i64: 32, 512>}]} {
    %c0 = arith.constant 0 : index
    %c0_0 = arith.constant 0 : index
    %0 = vector.load %arg1[%c0, %c0_0] : memref<32x4xf32, #tpu.memory_space<vmem>>, vector<32x4xf32>
    %c0_1 = arith.constant 0 : index
    %c0_2 = arith.constant 0 : index
    %1 = vector.load %arg2[%c0_1, %c0_2] : memref<4x256xf32, #tpu.memory_space<vmem>>, vector<4x256xf32>
    %cst = arith.constant dense<0.000000e+00> : vector<32x256xf32>
    %2 = tpu.matmul %0, %1, %cst {dimension_numbers = #tpu.dot_dimension_numbers<[1], [0], [0], [1], [0, 0, 1, 1], [], []>} : vector<32x4xf32>, vector<4x256xf32>, vector<32x256xf32> -> vector<32x256xf32>
    %3 = math.sin %2 : vector<32x256xf32>
    %4 = math.cos %2 : vector<32x256xf32>
    %c0_3 = arith.constant 0 : index
    %c0_4 = arith.constant 0 : index
    %5 = vector.load %arg3[%c0_3, %c0_4] : memref<32x512xf32, #tpu.memory_space<vmem>>, vector<32x256xf32>
    tpu.vector_store %arg3[%c0_3, %c0_4], %3 {strides = array<i32>} : memref<32x512xf32, #tpu.memory_space<vmem>>, vector<32x256xf32>,
    %c0_5 = arith.constant 0 : index
    %c256 = arith.constant 256 : index
    %6 = vector.load %arg3[%c0_5, %c256] : memref<32x512xf32, #tpu.memory_space<vmem>>, vector<32x256xf32>
    tpu.vector_store %arg3[%c0_5, %c256], %4 {strides = array<i32>} : memref<32x512xf32, #tpu.memory_space<vmem>>, vector<32x256xf32>,
    return
  }
  func.func @transform_0(%arg0: i32) -> (i32, i32) {
    %c0_i32 = arith.constant 0 : i32
    %c0_i32_0 = arith.constant 0 : i32
    return %arg0, %c0_i32 : i32, i32
  }
  func.func @transform_1(%arg0: i32) -> (i32, i32) {
    %c0_i32 = arith.constant 0 : i32
    %c0_i32_0 = arith.constant 0 : i32
    %c0_i32_1 = arith.constant 0 : i32
    return %c0_i32, %c0_i32_0 : i32, i32
  }
  func.func @transform_2(%arg0: i32) -> (i32, i32) {
    %c0_i32 = arith.constant 0 : i32
    %c0_i32_0 = arith.constant 0 : i32
    return %arg0, %c0_i32 : i32, i32
  }
}

</mosaic_0001>

<llo_original>
// kernel: gaussian_fourier_feature_transform.1
$region0: #{gaussian_fourier_feature_transform.1}
  #allocation0 [shape = 'u32[]', space=smem, size = 0x4, offset = 0x4, fixed_abs, tag = 'smem constant byte address 0x4 - core index']
  #allocation1 [shape = 'u32[144,128]{1,0:T(1,128)}', space=vmem, size = 0x12000, scoped, tag = 'internal scratch']
  %s0 = inlined_call_operand.vmem [shape: f32[128,4], index: 0, kind: input, shape index: {}]
  %s1 = inlined_call_operand.vmem [shape: f32[4,256], index: 1, kind: input, shape index: {}]
  %s2 = inlined_call_operand.hbm [shape: f32[128,512], index: 2, kind: output, shape index: {}]
  %s3 = sld [smem:[#allocation0]]
  $region41: #{gaussian_fourier_feature_transform.1} parent=0
    _
  %s5 = ssub.s32 1, %s3
  %s6 = scalar_select 0, %s5, %s3
  $region1: #{gaussian_fourier_feature_transform.1} parent=0
    #allocation2 [shape = 'u8[131072]{0}', space=vmem, size = 0x20000, scoped, tag = 'output window, operand 0']
    #allocation3 [shape = 's32[2]{0}', space=sflag, size = 0x8, scoped, tag = 'scoped memory for gaussian_fourier_feature_transform.1']
    %7 = vsyncpa [#allocation3], 0
    %s8 = scalar_lea.sflag [#allocation3], 1
    %9 = vsyncpa %s8, 0
    loop: start=0, step=1, limit=6
    $region2: #{gaussian_fourier_feature_transform.1} parent=1 // loop_pre_header
      _
    $region3: #{gaussian_fourier_feature_transform.1} parent=1 // loop_header
      %s11 = sphi 0, %s15
      %p12 = scmp.ge.s32.totalorder %s11, 6
      %s21 = sphi 0, %s23
      %s24 = sphi 0, %s21
      %s25 = sphi 0, %s24
      %s41 = sphi 0, %s25
      %s45 = sphi 0, %s45
      %s47 = sphi 0, %s45
      %s48 = sphi 0, %s47
      %s62 = sphi 0, %s48
      %s68 = sphi 0, %s70
      %s71 = sphi 0, %s68
      %s72 = sphi 0, %s71
      %s88 = sphi 0, %s72
    $region4: #{gaussian_fourier_feature_transform.1} parent=1 // loop_header_branch
      %14 = sbr.rel (%p12) target = $region8
    $region5: #{gaussian_fourier_feature_transform.1} parent=1 // loop_body
      %s16 = ssub.s32 %s11, 1
      %s17 = ssub.s32 %s11, 2
      %s18 = sadd.s32 %s11, 1
      %s19 = ssub.s32 %s11, %s18
      %p20 = scmp.eq.s32.totalorder %s19, 0
      %s22 = sadd.s32 %s21, 1
      %s23 = scalar_select %p20, %s21, %s22
      %p26 = pneg %p20
      %p27 = scmp.eq.s32.totalorder %s11, 3
      %p28 = por %p26, %p27
      %p29 = scmp.ne.s32.totalorder %s21, %s24
      %p30 = scmp.eq.s32.totalorder %s11, 0
      %p31 = por %p29, %p30
      %p32 = scmp.ne.s32.totalorder %s21, %s24
      %p33 = scmp.eq.s32.totalorder %s16, 3
      %p34 = por %p32, %p33
      %p35 = scmp.ne.s32.totalorder %s24, %s25
      %p36 = scmp.eq.s32.totalorder %s16, 0
      %p37 = por %p35, %p36
      %p38 = scmp.ne.s32.totalorder %s24, %s25
      %p39 = scmp.eq.s32.totalorder %s17, 3
      %p40 = por %p38, %p39
      %p42 = scmp.ne.s32.totalorder %s25, %s41
      %p43 = scmp.eq.s32.totalorder %s17, 0
      %p44 = por %p42, %p43
      %s46 = sadd.s32 %s45, 1
      %p49 = scmp.eq.s32.totalorder %s11, 3
      %p50 = scmp.ne.s32.totalorder %s45, %s47
      %p51 = scmp.eq.s32.totalorder %s11, 0
      %p52 = por %p50, %p51
      %p53 = scmp.ne.s32.totalorder %s45, %s47
      %p54 = scmp.eq.s32.totalorder %s16, 3
      %p55 = por %p53, %p54
      %p56 = scmp.ne.s32.totalorder %s47, %s48
      %p57 = scmp.eq.s32.totalorder %s16, 0
      %p58 = por %p56, %p57
      %p59 = scmp.ne.s32.totalorder %s47, %s48
      %p60 = scmp.eq.s32.totalorder %s17, 3
      %p61 = por %p59, %p60
      %p63 = scmp.ne.s32.totalorder %s48, %s62
      %p64 = scmp.eq.s32.totalorder %s17, 0
      %p65 = por %p63, %p64
      %s66 = ssub.s32 %s11, %s18
      %p67 = scmp.eq.s32.totalorder %s66, 0
      %s69 = sadd.s32 %s68, 1
      %s70 = scalar_select %p67, %s68, %s69
      %p73 = pneg %p67
      %p74 = scmp.eq.s32.totalorder %s11, 3
      %p75 = por %p73, %p74
      %p76 = scmp.ne.s32.totalorder %s68, %s71
      %p77 = scmp.eq.s32.totalorder %s11, 0
      %p78 = por %p76, %p77
      %p79 = scmp.ne.s32.totalorder %s68, %s71
      %p80 = scmp.eq.s32.totalorder %s16, 3
      %p81 = por %p79, %p80
      %p82 = scmp.ne.s32.totalorder %s71, %s72
      %p83 = scmp.eq.s32.totalorder %s16, 0
      %p84 = por %p82, %p83
      %p85 = scmp.ne.s32.totalorder %s71, %s72
      %p86 = scmp.eq.s32.totalorder %s17, 3
      %p87 = por %p85, %p86
      %p89 = scmp.ne.s32.totalorder %s72, %s88
      %p90 = scmp.eq.s32.totalorder %s17, 0
      %p91 = por %p89, %p90
      %p92 = scmp.le.s32.totalorder 1, %s11
      %p93 = scmp.lt.s32.totalorder %s11, 5
      %p94 = pnand %p92, %p93
      %p95 = pneg %p94
      // Predicated region
      $region9: #{gaussian_fourier_feature_transform.1} parent=5 // pred_check
        _
      $region10: #{gaussian_fourier_feature_transform.1} parent=5 // pred_check_branch
        %97 = sbr.rel (%p94) target = $region12
      $region11: #{gaussian_fourier_feature_transform.1} parent=5 // pred_region
        %s98 = ssub.s32 %s11, 1
        // Predicated region
        $region13: #{gaussian_fourier_feature_transform.1} parent=11 // pred_check
          %p99 = pneg %p58
        $region14: #{gaussian_fourier_feature_transform.1} parent=11 // pred_check_branch
          %101 = sbr.rel (%p99) target = $region16
        $region15: #{gaussian_fourier_feature_transform.1} parent=11 // pred_region
          _
        $region16: #{gaussian_fourier_feature_transform.1} parent=11 // pred_fallthru
          _
      $region12: #{gaussian_fourier_feature_transform.1} parent=5 // pred_fallthru
        _
      %p102 = scmp.lt.s32.totalorder %s11, 4
      // Predicated region
      $region17: #{gaussian_fourier_feature_transform.1} parent=5 // pred_check
        %p103 = pneg %p102
      $region18: #{gaussian_fourier_feature_transform.1} parent=5 // pred_check_branch
        %105 = sbr.rel (%p103) target = $region20
      $region19: #{gaussian_fourier_feature_transform.1} parent=5 // pred_region
        // Predicated region
        $region21: #{gaussian_fourier_feature_transform.1} parent=19 // pred_check
          %p106 = pneg %p31
        $region22: #{gaussian_fourier_feature_transform.1} parent=19 // pred_check_branch
          %108 = sbr.rel (%p106) target = $region24
        $region23: #{gaussian_fourier_feature_transform.1} parent=19 // pred_region
          %s109 = smul.u32 4, %s11
          %p110 = scmp.lt.s32.totalorder %s109, 15
          %s111 = scalar_select %p110, %s109, 15
          %s112 = smul.addr %s111, 8
          %s113 = scalar_lea.vmem %s0, %s112
          %s114 = smul.u32 4, %s11
        $region24: #{gaussian_fourier_feature_transform.1} parent=19 // pred_fallthru
          _
      $region20: #{gaussian_fourier_feature_transform.1} parent=5 // pred_fallthru
        _
      %p115 = scmp.le.s32.totalorder 1, %s11
      %p116 = scmp.lt.s32.totalorder %s11, 5
      %p117 = pnand %p115, %p116
      %p118 = pneg %p117
      // Predicated region
      $region25: #{gaussian_fourier_feature_transform.1} parent=5 // pred_check
        _
      $region26: #{gaussian_fourier_feature_transform.1} parent=5 // pred_check_branch
        %120 = sbr.rel (%p117) target = $region28
      $region27: #{gaussian_fourier_feature_transform.1} parent=5 // pred_region
        %s121 = ssub.s32 %s11, 1
        %s122 = smul.u32 4, %s16
        %p123 = scmp.lt.s32.totalorder %s122, 15
        %s124 = scalar_select %p123, %s122, 15
        %s125 = smul.addr %s124, 8
        %s126 = scalar_lea.vmem %s0, %s125
        %p127 = pneg %p37
        %p128 = pneg %p34
        %p129 = pneg %p58
        %p130 = pneg %p55
        %p131 = pneg %p84
        %p132 = pneg %p81
        %s133 = sand.u32 %s71, 1
        %s134 = scalar_lea.sflag [#allocation3], %s133
        %s135 = sand.u32 %s71, 1
        %s136 = smul.addr %s135, 128
        %s137 = scalar_lea.vmem [#allocation2], %s136
        %s138 = smul.u32 4, %s16
        %p139 = scmp.lt.s32.totalorder %s138, 15
        %s140 = scalar_select %p139, %s138, 15
        %s141 = smul.addr %s140, 8
        %s142 = scalar_lea.vmem %s0, %s141
        %s143 = smul.u32 4, %s16
        %s144 = smul.u32 4, %s16
        %v145 = vld [vmem:[%s142] sm:$0xff]
        %v146 = vld [vmem:[%s142 + $0x8] sm:$0xff]
        %v147 = vld [vmem:[%s142 + $0x10] sm:$0xff]
        %v148 = vld [vmem:[%s142 + $0x18] sm:$0xff]
        %v149 = vld [vmem:[%s1] sm:$0xff]
        %v151 = vcombine.high %v149, %v149
        %vm152 = vcmask 31744
        %v154 = vsel %vm152, %v145, 0
        %v157 = vsel %vm152, %v146, 0
        %v160 = vsel %vm152, %v147, 0
        %v163 = vsel %vm152, %v148, 0
        %vm165 = vcmask 1043456
        %v166 = vsel %vm165, %v149, 0
        %v168 = vsel %vm165, %v151, 0
        %170 = vmatprep.subr.mxu0 0.0
        %171 = vmatpush1.msra.mxu0 0.0
        %172 = vmatprep.subr.mxu0 0.0
        %173 = vmatpush1.msra.mxu0 0.0
        %174 = vmatprep.subr.mxu0 0.0
        %175 = vmatpush1.msra.mxu0 0.0
        %176 = vmatprep.subr.mxu0 0.0
        %177 = vmatpush1.msra.mxu0 0.0
        %178 = vmatprep.subr.mxu0 0.0
        %179 = vmatpush1.msra.mxu0 0.0
        %180 = vmatprep.subr.mxu0 0.0
        %181 = vmatpush1.msra.mxu0 0.0
        %182 = vmatprep.subr.mxu0 0.0
        %183 = vmatpush1.msra.mxu0 0.0
        %184 = vmatprep.subr.mxu0 0.0
        %185 = vmatpush1.msra.mxu0 0.0
        %186 = vmatprep.subr.mxu0 0.0
        %187 = vmatpush1.msra.mxu0 0.0
        %188 = vmatprep.subr.mxu0 0.0
        %189 = vmatpush1.msra.mxu0 0.0
        %190 = vmatprep.subr.mxu0 0.0
        %191 = vmatpush1.msra.mxu0 0.0
        %192 = vmatprep.subr.mxu0 0.0
        %193 = vmatpush1.msra.mxu0 0.0
        %194 = vmatprep.subr.mxu0 0.0
        %195 = vmatpush1.msra.mxu0 0.0
        %196 = vmatprep.subr.mxu0 0.0
        %197 = vmatpush1.msra.mxu0 0.0
        %198 = vmatprep.subr.mxu0 0.0
        %199 = vmatpush1.msra.mxu0 0.0
        %200 = vmatprep.subr.mxu0 %v168
        %201 = vmatpush1.msra.mxu0 %v166
        %202 = vmatprep.subr.mxu0 0.0
        %203 = vmatpush2.msra.mxu0 0.0
        %204 = vmatprep.subr.mxu0 0.0
        %205 = vmatpush2.msra.mxu0 0.0
        %206 = vmatprep.subr.mxu0 0.0
        %207 = vmatpush2.msra.mxu0 0.0
        %208 = vmatprep.subr.mxu0 0.0
        %209 = vmatpush2.msra.mxu0 0.0
        %210 = vmatprep.subr.mxu0 0.0
        %211 = vmatpush2.msra.mxu0 0.0
        %212 = vmatprep.subr.mxu0 0.0
        %213 = vmatpush2.msra.mxu0 0.0
        %214 = vmatprep.subr.mxu0 0.0
        %215 = vmatpush2.msra.mxu0 0.0
        %216 = vmatprep.subr.mxu0 0.0
        %217 = vmatpush2.msra.mxu0 0.0
        %218 = vmatprep.subr.mxu0 0.0
        %219 = vmatpush2.msra.mxu0 0.0
        %220 = vmatprep.subr.mxu0 0.0
        %221 = vmatpush2.msra.mxu0 0.0
        %222 = vmatprep.subr.mxu0 0.0
        %223 = vmatpush2.msra.mxu0 0.0
        %224 = vmatprep.subr.mxu0 0.0
        %225 = vmatpush2.msra.mxu0 0.0
        %226 = vmatprep.subr.mxu0 0.0
        %227 = vmatpush2.msra.mxu0 0.0
        %228 = vmatprep.subr.mxu0 0.0
        %229 = vmatpush2.msra.mxu0 0.0
        %230 = vmatprep.subr.mxu0 0.0
        %231 = vmatpush2.msra.mxu0 0.0
        %232 = vmatprep.subr.mxu0 0.0
        %233 = vmatpush2.msra.mxu0 0.0
        %234 = vmatprep.mubr.f32.mxu0 0.0
        %235 = vmatmul.mubr.f32.gmra.mxu0 %v154
        %v236 = vpop.f32.mrf.mxu0
        %v237 = vadd.f32 0.0, %v236
        %v238 = vpop.f32.mrf.mxu0
        %v239 = vadd.f32 0.0, %v238
        %240 = vmatprep.mubr.f32.mxu0 0.0
        %241 = vmatmul.mubr.f32.gmra.mxu0 %v157
        %v242 = vpop.f32.mrf.mxu0
        %v243 = vadd.f32 0.0, %v242
        %v244 = vpop.f32.mrf.mxu0
        %v245 = vadd.f32 0.0, %v244
        %246 = vmatprep.mubr.f32.mxu0 0.0
        %247 = vmatmul.mubr.f32.gmra.mxu0 %v160
        %v248 = vpop.f32.mrf.mxu0
        %v249 = vadd.f32 0.0, %v248
        %v250 = vpop.f32.mrf.mxu0
        %v251 = vadd.f32 0.0, %v250
        %252 = vmatprep.mubr.f32.mxu0 0.0
        %253 = vmatmul.mubr.f32.gmra.mxu0 %v163
        %v254 = vpop.f32.mrf.mxu0
        %v255 = vadd.f32 0.0, %v254
        %v256 = vpop.f32.mrf.mxu0
        %v257 = vadd.f32 0.0, %v256
        %258 = vdwg.mxu0
        %v259 = vand.u32 2147483647, %v237
        %vm260 = vcmp.le.f32.partialorder %v259, 0.7853982
        %vm261 = vcmp.lt.s32.totalorder %v237, 0
        %v262 = vand.u32 %v237, 2139095040
        %v263 = vshrl.u32 %v262, 23
        %v264 = vsub.s32 %v263, 127
        %v265 = vand.u32 2147483647, %v237
        %v266 = vand.u32 %v265, 8388607
        %v267 = vor.u32 %v266, 8388608
        %v268 = vsub.s32 0, %v267
        %v269 = vadd.s32 %v264, 1
        %vm270 = vcmp.gt.s32.totalorder %v269, 0
        %v271 = vsel %vm270, %v269, 0
        %v272 = vshrl.u32 %v271, 5
        %v273 = vand.u32 %v271, 31
        %v274 = vsub.s32 32, %v273
        %v275 = vshrl.u32 683565275, %v274
        %v276 = vshll.u32 683565275, %v273
        %v277 = vshrl.u32 2475754826, %v274
        %v278 = vor.u32 %v276, %v277
        %v279 = vshll.u32 2475754826, %v273
        %v280 = vshrl.u32 2131351028, %v274
        %v281 = vor.u32 %v279, %v280
        %v282 = vshll.u32 2131351028, %v273
        %v283 = vshrl.u32 2102212464, %v274
        %v284 = vor.u32 %v282, %v283
        %v285 = vshll.u32 2102212464, %v273
        %v286 = vshrl.u32 920167782, %v274
        %v287 = vor.u32 %v285, %v286
        %v288 = vshll.u32 920167782, %v273
        %v289 = vshrl.u32 1326507024, %v274
        %v290 = vor.u32 %v288, %v289
        %vm291 = vcmp.lt.s32.totalorder %v272, 1
        %vm292 = vcmp.lt.s32.totalorder %v272, 2
        %vm293 = vcmp.lt.s32.totalorder %v272, 3
        %vm294 = vcmp.lt.s32.totalorder %v272, 4
        %v295 = vsel %vm291, %v275, %v278
        %v296 = vsel %vm294, %v284, 2102212464
        %v297 = vsel %vm293, %v281, %v296
        %v298 = vsel %vm292, %v295, %v297
        %v299 = vsel %vm291, %v278, %v281
        %v300 = vsel %vm294, %v287, 920167782
        %v301 = vsel %vm293, %v284, %v300
        %v302 = vsel %vm292, %v299, %v301
        %v303 = vsel %vm291, %v281, %v284
        %v304 = vsel %vm294, %v290, 1326507024
        %v305 = vsel %vm293, %v287, %v304
        %v306 = vsel %vm292, %v303, %v305
        %v307 = vshll.u32 %v267, 8
        %v308 = vmul.u32.u64.compose %v307, %v306
        %v309 = vextract.low.u32 %v308
        %v310 = vextract.high.u32 %v308
        %v311 = vmul.u32.u64.compose %v307, %v302
        %v312 = vextract.low.u32 %v311
        %v313 = vextract.high.u32 %v311
        %v314 = vmul.u32 %v307, %v298
        %v315 = vadd.s32 %v310, %v312
        %vm316 = vc.u32 %v310, %v312
        %v317 = vadd.s32 %v313, 1
        %v318 = vsel %vm316, %v317, %v313
        %v319 = vadd.s32 %v314, %v318
        %v320 = vadd.s32 %v319, 536870912
        %v321 = vshrl.u32 %v320, 30
        %v322 = vshll.u32 %v321, 30
        %v323 = vsub.s32 %v319, %v322
        %vm324 = vcmp.lt.s32.totalorder %v323, 0
        %v325 = vsub.s32 0, %v323
        %v326 = vsel %vm324, %v325, %v323
        %v327 = vclz %v326
        %v328 = vsub.s32 %v327, 2
        %vm329 = vcmp.gt.s32.totalorder 0, %v328
        %v330 = vsel %vm329, 0, %v328
        %v331 = vsub.s32 32, %v330
        %v332 = vshll.u32 %v323, %v330
        %v333 = vshrl.u32 %v315, %v331
        %v334 = vor.u32 %v332, %v333
        %v335 = vsub.s32 4294967266, %v330
        %v336 = vadd.s32 %v335, 127
        %v337 = vshll.u32 %v336, 23
        %v338 = vor.u32 4788187, %v337
        %v339 = vand.u32 2147483647, %v338
        %v341 = vcvt.s32.f32 %v334
        %v342 = vmul.f32 %v341, %v339
        %v343 = vxor.u32 %v342, 2147483648
        %v344 = vsel %vm261, %v343, %v342
        %v345 = vsub.s32 4, %v321
        %v346 = vsel %vm261, %v345, %v321
        %v347 = vsel %vm260, %v237, %v344
        %v348 = vsel %vm260, 0, %v346
        %v349 = vcosq.f32.pop %v347
        %v350 = vsinq.f32.pop %v347
        %vm351 = vweird.f32 %v237
        %v352 = vadd.s32 %v348, 3
        %v353 = vand.u32 %v352, 3
        %vm354 = vcmp.lt.s32.totalorder %v353, 2
        %vm355 = vcmp.eq.s32.totalorder %v353, 0
        %v356 = vxor.u32 %v350, 2147483648
        %v357 = vsel %vm355, %v349, %v356
        %vm358 = vcmp.eq.s32.totalorder %v353, 2
        %v359 = vxor.u32 %v349, 2147483648
        %v360 = vsel %vm358, %v359, %v350
        %v361 = vsel %vm354, %v357, %v360
        %v362 = vsel %vm351, nan, %v361
        %v363 = vand.u32 2147483647, %v239
        %vm364 = vcmp.le.f32.partialorder %v363, 0.7853982
        %vm365 = vcmp.lt.s32.totalorder %v239, 0
        %v366 = vand.u32 %v239, 2139095040
        %v367 = vshrl.u32 %v366, 23
        %v368 = vsub.s32 %v367, 127
        %v369 = vand.u32 2147483647, %v239
        %v370 = vand.u32 %v369, 8388607
        %v371 = vor.u32 %v370, 8388608
        %v372 = vsub.s32 0, %v371
        %v373 = vadd.s32 %v368, 1
        %vm374 = vcmp.gt.s32.totalorder %v373, 0
        %v375 = vsel %vm374, %v373, 0
        %v376 = vshrl.u32 %v375, 5
        %v377 = vand.u32 %v375, 31
        %v378 = vsub.s32 32, %v377
        %v379 = vshrl.u32 683565275, %v378
        %v380 = vshll.u32 683565275, %v377
        %v381 = vshrl.u32 2475754826, %v378
        %v382 = vor.u32 %v380, %v381
        %v383 = vshll.u32 2475754826, %v377
        %v384 = vshrl.u32 2131351028, %v378
        %v385 = vor.u32 %v383, %v384
        %v386 = vshll.u32 2131351028, %v377
        %v387 = vshrl.u32 2102212464, %v378
        %v388 = vor.u32 %v386, %v387
        %v389 = vshll.u32 2102212464, %v377
        %v390 = vshrl.u32 920167782, %v378
        %v391 = vor.u32 %v389, %v390
        %v392 = vshll.u32 920167782, %v377
        %v393 = vshrl.u32 1326507024, %v378
        %v394 = vor.u32 %v392, %v393
        %vm395 = vcmp.lt.s32.totalorder %v376, 1
        %vm396 = vcmp.lt.s32.totalorder %v376, 2
        %vm397 = vcmp.lt.s32.totalorder %v376, 3
        %vm398 = vcmp.lt.s32.totalorder %v376, 4
        %v399 = vsel %vm395, %v379, %v382
        %v400 = vsel %vm398, %v388, 2102212464
        %v401 = vsel %vm397, %v385, %v400
        %v402 = vsel %vm396, %v399, %v401
        %v403 = vsel %vm395, %v382, %v385
        %v404 = vsel %vm398, %v391, 920167782
        %v405 = vsel %vm397, %v388, %v404
        %v406 = vsel %vm396, %v403, %v405
        %v407 = vsel %vm395, %v385, %v388
        %v408 = vsel %vm398, %v394, 1326507024
        %v409 = vsel %vm397, %v391, %v408
        %v410 = vsel %vm396, %v407, %v409
        %v411 = vshll.u32 %v371, 8
        %v412 = vmul.u32.u64.compose %v411, %v410
        %v413 = vextract.low.u32 %v412
        %v414 = vextract.high.u32 %v412
        %v415 = vmul.u32.u64.compose %v411, %v406
        %v416 = vextract.low.u32 %v415
        %v417 = vextract.high.u32 %v415
        %v418 = vmul.u32 %v411, %v402
        %v419 = vadd.s32 %v414, %v416
        %vm420 = vc.u32 %v414, %v416
        %v421 = vadd.s32 %v417, 1
        %v422 = vsel %vm420, %v421, %v417
        %v423 = vadd.s32 %v418, %v422
        %v424 = vadd.s32 %v423, 536870912
        %v425 = vshrl.u32 %v424, 30
        %v426 = vshll.u32 %v425, 30
        %v427 = vsub.s32 %v423, %v426
        %vm428 = vcmp.lt.s32.totalorder %v427, 0
        %v429 = vsub.s32 0, %v427
        %v430 = vsel %vm428, %v429, %v427
        %v431 = vclz %v430
        %v432 = vsub.s32 %v431, 2
        %vm433 = vcmp.gt.s32.totalorder 0, %v432
        %v434 = vsel %vm433, 0, %v432
        %v435 = vsub.s32 32, %v434
        %v436 = vshll.u32 %v427, %v434
        %v437 = vshrl.u32 %v419, %v435
        %v438 = vor.u32 %v436, %v437
        %v439 = vsub.s32 4294967266, %v434
        %v440 = vadd.s32 %v439, 127
        %v441 = vshll.u32 %v440, 23
        %v442 = vor.u32 4788187, %v441
        %v443 = vand.u32 2147483647, %v442
        %v445 = vcvt.s32.f32 %v438
        %v446 = vmul.f32 %v445, %v443
        %v447 = vxor.u32 %v446, 2147483648
        %v448 = vsel %vm365, %v447, %v446
        %v449 = vsub.s32 4, %v425
        %v450 = vsel %vm365, %v449, %v425
        %v451 = vsel %vm364, %v239, %v448
        %v452 = vsel %vm364, 0, %v450
        %v453 = vcosq.f32.pop %v451
        %v454 = vsinq.f32.pop %v451
        %vm455 = vweird.f32 %v239
        %v456 = vadd.s32 %v452, 3
        %v457 = vand.u32 %v456, 3
        %vm458 = vcmp.lt.s32.totalorder %v457, 2
        %vm459 = vcmp.eq.s32.totalorder %v457, 0
        %v460 = vxor.u32 %v454, 2147483648
        %v461 = vsel %vm459, %v453, %v460
        %vm462 = vcmp.eq.s32.totalorder %v457, 2
        %v463 = vxor.u32 %v453, 2147483648
        %v464 = vsel %vm462, %v463, %v454
        %v465 = vsel %vm458, %v461, %v464
        %v466 = vsel %vm455, nan, %v465
        %v467 = vand.u32 2147483647, %v243
        %vm468 = vcmp.le.f32.partialorder %v467, 0.7853982
        %vm469 = vcmp.lt.s32.totalorder %v243, 0
        %v470 = vand.u32 %v243, 2139095040
        %v471 = vshrl.u32 %v470, 23
        %v472 = vsub.s32 %v471, 127
        %v473 = vand.u32 2147483647, %v243
        %v474 = vand.u32 %v473, 8388607
        %v475 = vor.u32 %v474, 8388608
        %v476 = vsub.s32 0, %v475
        %v477 = vadd.s32 %v472, 1
        %vm478 = vcmp.gt.s32.totalorder %v477, 0
        %v479 = vsel %vm478, %v477, 0
        %v480 = vshrl.u32 %v479, 5
        %v481 = vand.u32 %v479, 31
        %v482 = vsub.s32 32, %v481
        %v483 = vshrl.u32 683565275, %v482
        %v484 = vshll.u32 683565275, %v481
        %v485 = vshrl.u32 2475754826, %v482
        %v486 = vor.u32 %v484, %v485
        %v487 = vshll.u32 2475754826, %v481
        %v488 = vshrl.u32 2131351028, %v482
        %v489 = vor.u32 %v487, %v488
        %v490 = vshll.u32 2131351028, %v481
        %v491 = vshrl.u32 2102212464, %v482
        %v492 = vor.u32 %v490, %v491
        %v493 = vshll.u32 2102212464, %v481
        %v494 = vshrl.u32 920167782, %v482
        %v495 = vor.u32 %v493, %v494
        %v496 = vshll.u32 920167782, %v481
        %v497 = vshrl.u32 1326507024, %v482
        %v498 = vor.u32 %v496, %v497
        %vm499 = vcmp.lt.s32.totalorder %v480, 1
        %vm500 = vcmp.lt.s32.totalorder %v480, 2
        %vm501 = vcmp.lt.s32.totalorder %v480, 3
        %vm502 = vcmp.lt.s32.totalorder %v480, 4
        %v503 = vsel %vm499, %v483, %v486
        %v504 = vsel %vm502, %v492, 2102212464
        %v505 = vsel %vm501, %v489, %v504
        %v506 = vsel %vm500, %v503, %v505
        %v507 = vsel %vm499, %v486, %v489
        %v508 = vsel %vm502, %v495, 920167782
        %v509 = vsel %vm501, %v492, %v508
        %v510 = vsel %vm500, %v507, %v509
        %v511 = vsel %vm499, %v489, %v492
        %v512 = vsel %vm502, %v498, 1326507024
        %v513 = vsel %vm501, %v495, %v512
        %v514 = vsel %vm500, %v511, %v513
        %v515 = vshll.u32 %v475, 8
        %v516 = vmul.u32.u64.compose %v515, %v514
        %v517 = vextract.low.u32 %v516
        %v518 = vextract.high.u32 %v516
        %v519 = vmul.u32.u64.compose %v515, %v510
        %v520 = vextract.low.u32 %v519
        %v521 = vextract.high.u32 %v519
        %v522 = vmul.u32 %v515, %v506
        %v523 = vadd.s32 %v518, %v520
        %vm524 = vc.u32 %v518, %v520
        %v525 = vadd.s32 %v521, 1
        %v526 = vsel %vm524, %v525, %v521
        %v527 = vadd.s32 %v522, %v526
        %v528 = vadd.s32 %v527, 536870912
        %v529 = vshrl.u32 %v528, 30
        %v530 = vshll.u32 %v529, 30
        %v531 = vsub.s32 %v527, %v530
        %vm532 = vcmp.lt.s32.totalorder %v531, 0
        %v533 = vsub.s32 0, %v531
        %v534 = vsel %vm532, %v533, %v531
        %v535 = vclz %v534
        %v536 = vsub.s32 %v535, 2
        %vm537 = vcmp.gt.s32.totalorder 0, %v536
        %v538 = vsel %vm537, 0, %v536
        %v539 = vsub.s32 32, %v538
        %v540 = vshll.u32 %v531, %v538
        %v541 = vshrl.u32 %v523, %v539
        %v542 = vor.u32 %v540, %v541
        %v543 = vsub.s32 4294967266, %v538
        %v544 = vadd.s32 %v543, 127
        %v545 = vshll.u32 %v544, 23
        %v546 = vor.u32 4788187, %v545
        %v547 = vand.u32 2147483647, %v546
        %v549 = vcvt.s32.f32 %v542
        %v550 = vmul.f32 %v549, %v547
        %v551 = vxor.u32 %v550, 2147483648
        %v552 = vsel %vm469, %v551, %v550
        %v553 = vsub.s32 4, %v529
        %v554 = vsel %vm469, %v553, %v529
        %v555 = vsel %vm468, %v243, %v552
        %v556 = vsel %vm468, 0, %v554
        %v557 = vcosq.f32.pop %v555
        %v558 = vsinq.f32.pop %v555
        %vm559 = vweird.f32 %v243
        %v560 = vadd.s32 %v556, 3
        %v561 = vand.u32 %v560, 3
        %vm562 = vcmp.lt.s32.totalorder %v561, 2
        %vm563 = vcmp.eq.s32.totalorder %v561, 0
        %v564 = vxor.u32 %v558, 2147483648
        %v565 = vsel %vm563, %v557, %v564
        %vm566 = vcmp.eq.s32.totalorder %v561, 2
        %v567 = vxor.u32 %v557, 2147483648
        %v568 = vsel %vm566, %v567, %v558
        %v569 = vsel %vm562, %v565, %v568
        %v570 = vsel %vm559, nan, %v569
        %v571 = vand.u32 2147483647, %v245
        %vm572 = vcmp.le.f32.partialorder %v571, 0.7853982
        %vm573 = vcmp.lt.s32.totalorder %v245, 0
        %v574 = vand.u32 %v245, 2139095040
        %v575 = vshrl.u32 %v574, 23
        %v576 = vsub.s32 %v575, 127
        %v577 = vand.u32 2147483647, %v245
        %v578 = vand.u32 %v577, 8388607
        %v579 = vor.u32 %v578, 8388608
        %v580 = vsub.s32 0, %v579
        %v581 = vadd.s32 %v576, 1
        %vm582 = vcmp.gt.s32.totalorder %v581, 0
        %v583 = vsel %vm582, %v581, 0
        %v584 = vshrl.u32 %v583, 5
        %v585 = vand.u32 %v583, 31
        %v586 = vsub.s32 32, %v585
        %v587 = vshrl.u32 683565275, %v586
        %v588 = vshll.u32 683565275, %v585
        %v589 = vshrl.u32 2475754826, %v586
        %v590 = vor.u32 %v588, %v589
        %v591 = vshll.u32 2475754826, %v585
        %v592 = vshrl.u32 2131351028, %v586
        %v593 = vor.u32 %v591, %v592
        %v594 = vshll.u32 2131351028, %v585
        %v595 = vshrl.u32 2102212464, %v586
        %v596 = vor.u32 %v594, %v595
        %v597 = vshll.u32 2102212464, %v585
        %v598 = vshrl.u32 920167782, %v586
        %v599 = vor.u32 %v597, %v598
        %v600 = vshll.u32 920167782, %v585
        %v601 = vshrl.u32 1326507024, %v586
        %v602 = vor.u32 %v600, %v601
        %vm603 = vcmp.lt.s32.totalorder %v584, 1
        %vm604 = vcmp.lt.s32.totalorder %v584, 2
        %vm605 = vcmp.lt.s32.totalorder %v584, 3
        %vm606 = vcmp.lt.s32.totalorder %v584, 4
        %v607 = vsel %vm603, %v587, %v590
        %v608 = vsel %vm606, %v596, 2102212464
        %v609 = vsel %vm605, %v593, %v608
        %v610 = vsel %vm604, %v607, %v609
        %v611 = vsel %vm603, %v590, %v593
        %v612 = vsel %vm606, %v599, 920167782
        %v613 = vsel %vm605, %v596, %v612
        %v614 = vsel %vm604, %v611, %v613
        %v615 = vsel %vm603, %v593, %v596
        %v616 = vsel %vm606, %v602, 1326507024
        %v617 = vsel %vm605, %v599, %v616
        %v618 = vsel %vm604, %v615, %v617
        %v619 = vshll.u32 %v579, 8
        %v620 = vmul.u32.u64.compose %v619, %v618
        %v621 = vextract.low.u32 %v620
        %v622 = vextract.high.u32 %v620
        %v623 = vmul.u32.u64.compose %v619, %v614
        %v624 = vextract.low.u32 %v623
        %v625 = vextract.high.u32 %v623
        %v626 = vmul.u32 %v619, %v610
        %v627 = vadd.s32 %v622, %v624
        %vm628 = vc.u32 %v622, %v624
        %v629 = vadd.s32 %v625, 1
        %v630 = vsel %vm628, %v629, %v625
        %v631 = vadd.s32 %v626, %v630
        %v632 = vadd.s32 %v631, 536870912
        %v633 = vshrl.u32 %v632, 30
        %v634 = vshll.u32 %v633, 30
        %v635 = vsub.s32 %v631, %v634
        %vm636 = vcmp.lt.s32.totalorder %v635, 0
        %v637 = vsub.s32 0, %v635
        %v638 = vsel %vm636, %v637, %v635
        %v639 = vclz %v638
        %v640 = vsub.s32 %v639, 2
        %vm641 = vcmp.gt.s32.totalorder 0, %v640
        %v642 = vsel %vm641, 0, %v640
        %v643 = vsub.s32 32, %v642
        %v644 = vshll.u32 %v635, %v642
        %v645 = vshrl.u32 %v627, %v643
        %v646 = vor.u32 %v644, %v645
        %v647 = vsub.s32 4294967266, %v642
        %v648 = vadd.s32 %v647, 127
        %v649 = vshll.u32 %v648, 23
        %v650 = vor.u32 4788187, %v649
        %v651 = vand.u32 2147483647, %v650
        %v653 = vcvt.s32.f32 %v646
        %v654 = vmul.f32 %v653, %v651
        %v655 = vxor.u32 %v654, 2147483648
        %v656 = vsel %vm573, %v655, %v654
        %v657 = vsub.s32 4, %v633
        %v658 = vsel %vm573, %v657, %v633
        %v659 = vsel %vm572, %v245, %v656
        %v660 = vsel %vm572, 0, %v658
        %v661 = vcosq.f32.pop %v659
        %v662 = vsinq.f32.pop %v659
        %vm663 = vweird.f32 %v245
        %v664 = vadd.s32 %v660, 3
        %v665 = vand.u32 %v664, 3
        %vm666 = vcmp.lt.s32.totalorder %v665, 2
        %vm667 = vcmp.eq.s32.totalorder %v665, 0
        %v668 = vxor.u32 %v662, 2147483648
        %v669 = vsel %vm667, %v661, %v668
        %vm670 = vcmp.eq.s32.totalorder %v665, 2
        %v671 = vxor.u32 %v661, 2147483648
        %v672 = vsel %vm670, %v671, %v662
        %v673 = vsel %vm666, %v669, %v672
        %v674 = vsel %vm663, nan, %v673
        %v675 = vand.u32 2147483647, %v249
        %vm676 = vcmp.le.f32.partialorder %v675, 0.7853982
        %vm677 = vcmp.lt.s32.totalorder %v249, 0
        %v678 = vand.u32 %v249, 2139095040
        %v679 = vshrl.u32 %v678, 23
        %v680 = vsub.s32 %v679, 127
        %v681 = vand.u32 2147483647, %v249
        %v682 = vand.u32 %v681, 8388607
        %v683 = vor.u32 %v682, 8388608
        %v684 = vsub.s32 0, %v683
        %v685 = vadd.s32 %v680, 1
        %vm686 = vcmp.gt.s32.totalorder %v685, 0
        %v687 = vsel %vm686, %v685, 0
        %v688 = vshrl.u32 %v687, 5
        %v689 = vand.u32 %v687, 31
        %v690 = vsub.s32 32, %v689
        %v691 = vshrl.u32 683565275, %v690
        %v692 = vshll.u32 683565275, %v689
        %v693 = vshrl.u32 2475754826, %v690
        %v694 = vor.u32 %v692, %v693
        %v695 = vshll.u32 2475754826, %v689
        %v696 = vshrl.u32 2131351028, %v690
        %v697 = vor.u32 %v695, %v696
        %v698 = vshll.u32 2131351028, %v689
        %v699 = vshrl.u32 2102212464, %v690
        %v700 = vor.u32 %v698, %v699
        %v701 = vshll.u32 2102212464, %v689
        %v702 = vshrl.u32 920167782, %v690
        %v703 = vor.u32 %v701, %v702
        %v704 = vshll.u32 920167782, %v689
        %v705 = vshrl.u32 1326507024, %v690
        %v706 = vor.u32 %v704, %v705
        %vm707 = vcmp.lt.s32.totalorder %v688, 1
        %vm708 = vcmp.lt.s32.totalorder %v688, 2
        %vm709 = vcmp.lt.s32.totalorder %v688, 3
        %vm710 = vcmp.lt.s32.totalorder %v688, 4
        %v711 = vsel %vm707, %v691, %v694
        %v712 = vsel %vm710, %v700, 2102212464
        %v713 = vsel %vm709, %v697, %v712
        %v714 = vsel %vm708, %v711, %v713
        %v715 = vsel %vm707, %v694, %v697
        %v716 = vsel %vm710, %v703, 920167782
        %v717 = vsel %vm709, %v700, %v716
        %v718 = vsel %vm708, %v715, %v717
        %v719 = vsel %vm707, %v697, %v700
        %v720 = vsel %vm710, %v706, 1326507024
        %v721 = vsel %vm709, %v703, %v720
        %v722 = vsel %vm708, %v719, %v721
        %v723 = vshll.u32 %v683, 8
        %v724 = vmul.u32.u64.compose %v723, %v722
        %v725 = vextract.low.u32 %v724
        %v726 = vextract.high.u32 %v724
        %v727 = vmul.u32.u64.compose %v723, %v718
        %v728 = vextract.low.u32 %v727
        %v729 = vextract.high.u32 %v727
        %v730 = vmul.u32 %v723, %v714
        %v731 = vadd.s32 %v726, %v728
        %vm732 = vc.u32 %v726, %v728
        %v733 = vadd.s32 %v729, 1
        %v734 = vsel %vm732, %v733, %v729
        %v735 = vadd.s32 %v730, %v734
        %v736 = vadd.s32 %v735, 536870912
        %v737 = vshrl.u32 %v736, 30
        %v738 = vshll.u32 %v737, 30
        %v739 = vsub.s32 %v735, %v738
        %vm740 = vcmp.lt.s32.totalorder %v739, 0
        %v741 = vsub.s32 0, %v739
        %v742 = vsel %vm740, %v741, %v739
        %v743 = vclz %v742
        %v744 = vsub.s32 %v743, 2
        %vm745 = vcmp.gt.s32.totalorder 0, %v744
        %v746 = vsel %vm745, 0, %v744
        %v747 = vsub.s32 32, %v746
        %v748 = vshll.u32 %v739, %v746
        %v749 = vshrl.u32 %v731, %v747
        %v750 = vor.u32 %v748, %v749
        %v751 = vsub.s32 4294967266, %v746
        %v752 = vadd.s32 %v751, 127
        %v753 = vshll.u32 %v752, 23
        %v754 = vor.u32 4788187, %v753
        %v755 = vand.u32 2147483647, %v754
        %v757 = vcvt.s32.f32 %v750
        %v758 = vmul.f32 %v757, %v755
        %v759 = vxor.u32 %v758, 2147483648
        %v760 = vsel %vm677, %v759, %v758
        %v761 = vsub.s32 4, %v737
        %v762 = vsel %vm677, %v761, %v737
        %v763 = vsel %vm676, %v249, %v760
        %v764 = vsel %vm676, 0, %v762
        %v765 = vcosq.f32.pop %v763
        %v766 = vsinq.f32.pop %v763
        %vm767 = vweird.f32 %v249
        %v768 = vadd.s32 %v764, 3
        %v769 = vand.u32 %v768, 3
        %vm770 = vcmp.lt.s32.totalorder %v769, 2
        %vm771 = vcmp.eq.s32.totalorder %v769, 0
        %v772 = vxor.u32 %v766, 2147483648
        %v773 = vsel %vm771, %v765, %v772
        %vm774 = vcmp.eq.s32.totalorder %v769, 2
        %v775 = vxor.u32 %v765, 2147483648
        %v776 = vsel %vm774, %v775, %v766
        %v777 = vsel %vm770, %v773, %v776
        %v778 = vsel %vm767, nan, %v777
        %v779 = vand.u32 2147483647, %v251
        %vm780 = vcmp.le.f32.partialorder %v779, 0.7853982
        %vm781 = vcmp.lt.s32.totalorder %v251, 0
        %v782 = vand.u32 %v251, 2139095040
        %v783 = vshrl.u32 %v782, 23
        %v784 = vsub.s32 %v783, 127
        %v785 = vand.u32 2147483647, %v251
        %v786 = vand.u32 %v785, 8388607
        %v787 = vor.u32 %v786, 8388608
        %v788 = vsub.s32 0, %v787
        %v789 = vadd.s32 %v784, 1
        %vm790 = vcmp.gt.s32.totalorder %v789, 0
        %v791 = vsel %vm790, %v789, 0
        %v792 = vshrl.u32 %v791, 5
        %v793 = vand.u32 %v791, 31
        %v794 = vsub.s32 32, %v793
        %v795 = vshrl.u32 683565275, %v794
        %v796 = vshll.u32 683565275, %v793
        %v797 = vshrl.u32 2475754826, %v794
        %v798 = vor.u32 %v796, %v797
        %v799 = vshll.u32 2475754826, %v793
        %v800 = vshrl.u32 2131351028, %v794
        %v801 = vor.u32 %v799, %v800
        %v802 = vshll.u32 2131351028, %v793
        %v803 = vshrl.u32 2102212464, %v794
        %v804 = vor.u32 %v802, %v803
        %v805 = vshll.u32 2102212464, %v793
        %v806 = vshrl.u32 920167782, %v794
        %v807 = vor.u32 %v805, %v806
        %v808 = vshll.u32 920167782, %v793
        %v809 = vshrl.u32 1326507024, %v794
        %v810 = vor.u32 %v808, %v809
        %vm811 = vcmp.lt.s32.totalorder %v792, 1
        %vm812 = vcmp.lt.s32.totalorder %v792, 2
        %vm813 = vcmp.lt.s32.totalorder %v792, 3
        %vm814 = vcmp.lt.s32.totalorder %v792, 4
        %v815 = vsel %vm811, %v795, %v798
        %v816 = vsel %vm814, %v804, 2102212464
        %v817 = vsel %vm813, %v801, %v816
        %v818 = vsel %vm812, %v815, %v817
        %v819 = vsel %vm811, %v798, %v801
        %v820 = vsel %vm814, %v807, 920167782
        %v821 = vsel %vm813, %v804, %v820
        %v822 = vsel %vm812, %v819, %v821
        %v823 = vsel %vm811, %v801, %v804
        %v824 = vsel %vm814, %v810, 1326507024
        %v825 = vsel %vm813, %v807, %v824
        %v826 = vsel %vm812, %v823, %v825
        %v827 = vshll.u32 %v787, 8
        %v828 = vmul.u32.u64.compose %v827, %v826
        %v829 = vextract.low.u32 %v828
        %v830 = vextract.high.u32 %v828
        %v831 = vmul.u32.u64.compose %v827, %v822
        %v832 = vextract.low.u32 %v831
        %v833 = vextract.high.u32 %v831
        %v834 = vmul.u32 %v827, %v818
        %v835 = vadd.s32 %v830, %v832
        %vm836 = vc.u32 %v830, %v832
        %v837 = vadd.s32 %v833, 1
        %v838 = vsel %vm836, %v837, %v833
        %v839 = vadd.s32 %v834, %v838
        %v840 = vadd.s32 %v839, 536870912
        %v841 = vshrl.u32 %v840, 30
        %v842 = vshll.u32 %v841, 30
        %v843 = vsub.s32 %v839, %v842
        %vm844 = vcmp.lt.s32.totalorder %v843, 0
        %v845 = vsub.s32 0, %v843
        %v846 = vsel %vm844, %v845, %v843
        %v847 = vclz %v846
        %v848 = vsub.s32 %v847, 2
        %vm849 = vcmp.gt.s32.totalorder 0, %v848
        %v850 = vsel %vm849, 0, %v848
        %v851 = vsub.s32 32, %v850
        %v852 = vshll.u32 %v843, %v850
        %v853 = vshrl.u32 %v835, %v851
        %v854 = vor.u32 %v852, %v853
        %v855 = vsub.s32 4294967266, %v850
        %v856 = vadd.s32 %v855, 127
        %v857 = vshll.u32 %v856, 23
        %v858 = vor.u32 4788187, %v857
        %v859 = vand.u32 2147483647, %v858
        %v861 = vcvt.s32.f32 %v854
        %v862 = vmul.f32 %v861, %v859
        %v863 = vxor.u32 %v862, 2147483648
        %v864 = vsel %vm781, %v863, %v862
        %v865 = vsub.s32 4, %v841
        %v866 = vsel %vm781, %v865, %v841
        %v867 = vsel %vm780, %v251, %v864
        %v868 = vsel %vm780, 0, %v866
        %v869 = vcosq.f32.pop %v867
        %v870 = vsinq.f32.pop %v867
        %vm871 = vweird.f32 %v251
        %v872 = vadd.s32 %v868, 3
        %v873 = vand.u32 %v872, 3
        %vm874 = vcmp.lt.s32.totalorder %v873, 2
        %vm875 = vcmp.eq.s32.totalorder %v873, 0
        %v876 = vxor.u32 %v870, 2147483648
        %v877 = vsel %vm875, %v869, %v876
        %vm878 = vcmp.eq.s32.totalorder %v873, 2
        %v879 = vxor.u32 %v869, 2147483648
        %v880 = vsel %vm878, %v879, %v870
        %v881 = vsel %vm874, %v877, %v880
        %v882 = vsel %vm871, nan, %v881
        %v883 = vand.u32 2147483647, %v255
        %vm884 = vcmp.le.f32.partialorder %v883, 0.7853982
        %vm885 = vcmp.lt.s32.totalorder %v255, 0
        %v886 = vand.u32 %v255, 2139095040
        %v887 = vshrl.u32 %v886, 23
        %v888 = vsub.s32 %v887, 127
        %v889 = vand.u32 2147483647, %v255
        %v890 = vand.u32 %v889, 8388607
        %v891 = vor.u32 %v890, 8388608
        %v892 = vsub.s32 0, %v891
        %v893 = vadd.s32 %v888, 1
        %vm894 = vcmp.gt.s32.totalorder %v893, 0
        %v895 = vsel %vm894, %v893, 0
        %v896 = vshrl.u32 %v895, 5
        %v897 = vand.u32 %v895, 31
        %v898 = vsub.s32 32, %v897
        %v899 = vshrl.u32 683565275, %v898
        %v900 = vshll.u32 683565275, %v897
        %v901 = vshrl.u32 2475754826, %v898
        %v902 = vor.u32 %v900, %v901
        %v903 = vshll.u32 2475754826, %v897
        %v904 = vshrl.u32 2131351028, %v898
        %v905 = vor.u32 %v903, %v904
        %v906 = vshll.u32 2131351028, %v897
        %v907 = vshrl.u32 2102212464, %v898
        %v908 = vor.u32 %v906, %v907
        %v909 = vshll.u32 2102212464, %v897
        %v910 = vshrl.u32 920167782, %v898
        %v911 = vor.u32 %v909, %v910
        %v912 = vshll.u32 920167782, %v897
        %v913 = vshrl.u32 1326507024, %v898
        %v914 = vor.u32 %v912, %v913
        %vm915 = vcmp.lt.s32.totalorder %v896, 1
        %vm916 = vcmp.lt.s32.totalorder %v896, 2
        %vm917 = vcmp.lt.s32.totalorder %v896, 3
        %vm918 = vcmp.lt.s32.totalorder %v896, 4
        %v919 = vsel %vm915, %v899, %v902
        %v920 = vsel %vm918, %v908, 2102212464
        %v921 = vsel %vm917, %v905, %v920
        %v922 = vsel %vm916, %v919, %v921
        %v923 = vsel %vm915, %v902, %v905
        %v924 = vsel %vm918, %v911, 920167782
        %v925 = vsel %vm917, %v908, %v924
        %v926 = vsel %vm916, %v923, %v925
        %v927 = vsel %vm915, %v905, %v908
        %v928 = vsel %vm918, %v914, 1326507024
        %v929 = vsel %vm917, %v911, %v928
        %v930 = vsel %vm916, %v927, %v929
        %v931 = vshll.u32 %v891, 8
        %v932 = vmul.u32.u64.compose %v931, %v930
        %v933 = vextract.low.u32 %v932
        %v934 = vextract.high.u32 %v932
        %v935 = vmul.u32.u64.compose %v931, %v926
        %v936 = vextract.low.u32 %v935
        %v937 = vextract.high.u32 %v935
        %v938 = vmul.u32 %v931, %v922
        %v939 = vadd.s32 %v934, %v936
        %vm940 = vc.u32 %v934, %v936
        %v941 = vadd.s32 %v937, 1
        %v942 = vsel %vm940, %v941, %v937
        %v943 = vadd.s32 %v938, %v942
        %v944 = vadd.s32 %v943, 536870912
        %v945 = vshrl.u32 %v944, 30
        %v946 = vshll.u32 %v945, 30
        %v947 = vsub.s32 %v943, %v946
        %vm948 = vcmp.lt.s32.totalorder %v947, 0
        %v949 = vsub.s32 0, %v947
        %v950 = vsel %vm948, %v949, %v947
        %v951 = vclz %v950
        %v952 = vsub.s32 %v951, 2
        %vm953 = vcmp.gt.s32.totalorder 0, %v952
        %v954 = vsel %vm953, 0, %v952
        %v955 = vsub.s32 32, %v954
        %v956 = vshll.u32 %v947, %v954
        %v957 = vshrl.u32 %v939, %v955
        %v958 = vor.u32 %v956, %v957
        %v959 = vsub.s32 4294967266, %v954
        %v960 = vadd.s32 %v959, 127
        %v961 = vshll.u32 %v960, 23
        %v962 = vor.u32 4788187, %v961
        %v963 = vand.u32 2147483647, %v962
        %v965 = vcvt.s32.f32 %v958
        %v966 = vmul.f32 %v965, %v963
        %v967 = vxor.u32 %v966, 2147483648
        %v968 = vsel %vm885, %v967, %v966
        %v969 = vsub.s32 4, %v945
        %v970 = vsel %vm885, %v969, %v945
        %v971 = vsel %vm884, %v255, %v968
        %v972 = vsel %vm884, 0, %v970
        %v973 = vcosq.f32.pop %v971
        %v974 = vsinq.f32.pop %v971
        %vm975 = vweird.f32 %v255
        %v976 = vadd.s32 %v972, 3
        %v977 = vand.u32 %v976, 3
        %vm978 = vcmp.lt.s32.totalorder %v977, 2
        %vm979 = vcmp.eq.s32.totalorder %v977, 0
        %v980 = vxor.u32 %v974, 2147483648
        %v981 = vsel %vm979, %v973, %v980
        %vm982 = vcmp.eq.s32.totalorder %v977, 2
        %v983 = vxor.u32 %v973, 2147483648
        %v984 = vsel %vm982, %v983, %v974
        %v985 = vsel %vm978, %v981, %v984
        %v986 = vsel %vm975, nan, %v985
        %v987 = vand.u32 2147483647, %v257
        %vm988 = vcmp.le.f32.partialorder %v987, 0.7853982
        %vm989 = vcmp.lt.s32.totalorder %v257, 0
        %v990 = vand.u32 %v257, 2139095040
        %v991 = vshrl.u32 %v990, 23
        %v992 = vsub.s32 %v991, 127
        %v993 = vand.u32 2147483647, %v257
        %v994 = vand.u32 %v993, 8388607
        %v995 = vor.u32 %v994, 8388608
        %v996 = vsub.s32 0, %v995
        %v997 = vadd.s32 %v992, 1
        %vm998 = vcmp.gt.s32.totalorder %v997, 0
        %v999 = vsel %vm998, %v997, 0
        %v1000 = vshrl.u32 %v999, 5
        %v1001 = vand.u32 %v999, 31
        %v1002 = vsub.s32 32, %v1001
        %v1003 = vshrl.u32 683565275, %v1002
        %v1004 = vshll.u32 683565275, %v1001
        %v1005 = vshrl.u32 2475754826, %v1002
        %v1006 = vor.u32 %v1004, %v1005
        %v1007 = vshll.u32 2475754826, %v1001
        %v1008 = vshrl.u32 2131351028, %v1002
        %v1009 = vor.u32 %v1007, %v1008
        %v1010 = vshll.u32 2131351028, %v1001
        %v1011 = vshrl.u32 2102212464, %v1002
        %v1012 = vor.u32 %v1010, %v1011
        %v1013 = vshll.u32 2102212464, %v1001
        %v1014 = vshrl.u32 920167782, %v1002
        %v1015 = vor.u32 %v1013, %v1014
        %v1016 = vshll.u32 920167782, %v1001
        %v1017 = vshrl.u32 1326507024, %v1002
        %v1018 = vor.u32 %v1016, %v1017
        %vm1019 = vcmp.lt.s32.totalorder %v1000, 1
        %vm1020 = vcmp.lt.s32.totalorder %v1000, 2
        %vm1021 = vcmp.lt.s32.totalorder %v1000, 3
        %vm1022 = vcmp.lt.s32.totalorder %v1000, 4
        %v1023 = vsel %vm1019, %v1003, %v1006
        %v1024 = vsel %vm1022, %v1012, 2102212464
        %v1025 = vsel %vm1021, %v1009, %v1024
        %v1026 = vsel %vm1020, %v1023, %v1025
        %v1027 = vsel %vm1019, %v1006, %v1009
        %v1028 = vsel %vm1022, %v1015, 920167782
        %v1029 = vsel %vm1021, %v1012, %v1028
        %v1030 = vsel %vm1020, %v1027, %v1029
        %v1031 = vsel %vm1019, %v1009, %v1012
        %v1032 = vsel %vm1022, %v1018, 1326507024
        %v1033 = vsel %vm1021, %v1015, %v1032
        %v1034 = vsel %vm1020, %v1031, %v1033
        %v1035 = vshll.u32 %v995, 8
        %v1036 = vmul.u32.u64.compose %v1035, %v1034
        %v1037 = vextract.low.u32 %v1036
        %v1038 = vextract.high.u32 %v1036
        %v1039 = vmul.u32.u64.compose %v1035, %v1030
        %v1040 = vextract.low.u32 %v1039
        %v1041 = vextract.high.u32 %v1039
        %v1042 = vmul.u32 %v1035, %v1026
        %v1043 = vadd.s32 %v1038, %v1040
        %vm1044 = vc.u32 %v1038, %v1040
        %v1045 = vadd.s32 %v1041, 1
        %v1046 = vsel %vm1044, %v1045, %v1041
        %v1047 = vadd.s32 %v1042, %v1046
        %v1048 = vadd.s32 %v1047, 536870912
        %v1049 = vshrl.u32 %v1048, 30
        %v1050 = vshll.u32 %v1049, 30
        %v1051 = vsub.s32 %v1047, %v1050
        %vm1052 = vcmp.lt.s32.totalorder %v1051, 0
        %v1053 = vsub.s32 0, %v1051
        %v1054 = vsel %vm1052, %v1053, %v1051
        %v1055 = vclz %v1054
        %v1056 = vsub.s32 %v1055, 2
        %vm1057 = vcmp.gt.s32.totalorder 0, %v1056
        %v1058 = vsel %vm1057, 0, %v1056
        %v1059 = vsub.s32 32, %v1058
        %v1060 = vshll.u32 %v1051, %v1058
        %v1061 = vshrl.u32 %v1043, %v1059
        %v1062 = vor.u32 %v1060, %v1061
        %v1063 = vsub.s32 4294967266, %v1058
        %v1064 = vadd.s32 %v1063, 127
        %v1065 = vshll.u32 %v1064, 23
        %v1066 = vor.u32 4788187, %v1065
        %v1067 = vand.u32 2147483647, %v1066
        %v1069 = vcvt.s32.f32 %v1062
        %v1070 = vmul.f32 %v1069, %v1067
        %v1071 = vxor.u32 %v1070, 2147483648
        %v1072 = vsel %vm989, %v1071, %v1070
        %v1073 = vsub.s32 4, %v1049
        %v1074 = vsel %vm989, %v1073, %v1049
        %v1075 = vsel %vm988, %v257, %v1072
        %v1076 = vsel %vm988, 0, %v1074
        %v1077 = vcosq.f32.pop %v1075
        %v1078 = vsinq.f32.pop %v1075
        %vm1079 = vweird.f32 %v257
        %v1080 = vadd.s32 %v1076, 3
        %v1081 = vand.u32 %v1080, 3
        %vm1082 = vcmp.lt.s32.totalorder %v1081, 2
        %vm1083 = vcmp.eq.s32.totalorder %v1081, 0
        %v1084 = vxor.u32 %v1078, 2147483648
        %v1085 = vsel %vm1083, %v1077, %v1084
        %vm1086 = vcmp.eq.s32.totalorder %v1081, 2
        %v1087 = vxor.u32 %v1077, 2147483648
        %v1088 = vsel %vm1086, %v1087, %v1078
        %v1089 = vsel %vm1082, %v1085, %v1088
        %v1090 = vsel %vm1079, nan, %v1089
        %v1091 = vand.u32 2147483647, %v237
        %vm1092 = vcmp.le.f32.partialorder %v1091, 0.7853982
        %vm1093 = vcmp.lt.s32.totalorder %v237, 0
        %v1094 = vand.u32 %v237, 2139095040
        %v1095 = vshrl.u32 %v1094, 23
        %v1096 = vsub.s32 %v1095, 127
        %v1097 = vand.u32 2147483647, %v237
        %v1098 = vand.u32 %v1097, 8388607
        %v1099 = vor.u32 %v1098, 8388608
        %v1100 = vsub.s32 0, %v1099
        %v1101 = vadd.s32 %v1096, 1
        %vm1102 = vcmp.gt.s32.totalorder %v1101, 0
        %v1103 = vsel %vm1102, %v1101, 0
        %v1104 = vshrl.u32 %v1103, 5
        %v1105 = vand.u32 %v1103, 31
        %v1106 = vsub.s32 32, %v1105
        %v1107 = vshrl.u32 683565275, %v1106
        %v1108 = vshll.u32 683565275, %v1105
        %v1109 = vshrl.u32 2475754826, %v1106
        %v1110 = vor.u32 %v1108, %v1109
        %v1111 = vshll.u32 2475754826, %v1105
        %v1112 = vshrl.u32 2131351028, %v1106
        %v1113 = vor.u32 %v1111, %v1112
        %v1114 = vshll.u32 2131351028, %v1105
        %v1115 = vshrl.u32 2102212464, %v1106
        %v1116 = vor.u32 %v1114, %v1115
        %v1117 = vshll.u32 2102212464, %v1105
        %v1118 = vshrl.u32 920167782, %v1106
        %v1119 = vor.u32 %v1117, %v1118
        %v1120 = vshll.u32 920167782, %v1105
        %v1121 = vshrl.u32 1326507024, %v1106
        %v1122 = vor.u32 %v1120, %v1121
        %vm1123 = vcmp.lt.s32.totalorder %v1104, 1
        %vm1124 = vcmp.lt.s32.totalorder %v1104, 2
        %vm1125 = vcmp.lt.s32.totalorder %v1104, 3
        %vm1126 = vcmp.lt.s32.totalorder %v1104, 4
        %v1127 = vsel %vm1123, %v1107, %v1110
        %v1128 = vsel %vm1126, %v1116, 2102212464
        %v1129 = vsel %vm1125, %v1113, %v1128
        %v1130 = vsel %vm1124, %v1127, %v1129
        %v1131 = vsel %vm1123, %v1110, %v1113
        %v1132 = vsel %vm1126, %v1119, 920167782
        %v1133 = vsel %vm1125, %v1116, %v1132
        %v1134 = vsel %vm1124, %v1131, %v1133
        %v1135 = vsel %vm1123, %v1113, %v1116
        %v1136 = vsel %vm1126, %v1122, 1326507024
        %v1137 = vsel %vm1125, %v1119, %v1136
        %v1138 = vsel %vm1124, %v1135, %v1137
        %v1139 = vshll.u32 %v1099, 8
        %v1140 = vmul.u32.u64.compose %v1139, %v1138
        %v1141 = vextract.low.u32 %v1140
        %v1142 = vextract.high.u32 %v1140
        %v1143 = vmul.u32.u64.compose %v1139, %v1134
        %v1144 = vextract.low.u32 %v1143
        %v1145 = vextract.high.u32 %v1143
        %v1146 = vmul.u32 %v1139, %v1130
        %v1147 = vadd.s32 %v1142, %v1144
        %vm1148 = vc.u32 %v1142, %v1144
        %v1149 = vadd.s32 %v1145, 1
        %v1150 = vsel %vm1148, %v1149, %v1145
        %v1151 = vadd.s32 %v1146, %v1150
        %v1152 = vadd.s32 %v1151, 536870912
        %v1153 = vshrl.u32 %v1152, 30
        %v1154 = vshll.u32 %v1153, 30
        %v1155 = vsub.s32 %v1151, %v1154
        %vm1156 = vcmp.lt.s32.totalorder %v1155, 0
        %v1157 = vsub.s32 0, %v1155
        %v1158 = vsel %vm1156, %v1157, %v1155
        %v1159 = vclz %v1158
        %v1160 = vsub.s32 %v1159, 2
        %vm1161 = vcmp.gt.s32.totalorder 0, %v1160
        %v1162 = vsel %vm1161, 0, %v1160
        %v1163 = vsub.s32 32, %v1162
        %v1164 = vshll.u32 %v1155, %v1162
        %v1165 = vshrl.u32 %v1147, %v1163
        %v1166 = vor.u32 %v1164, %v1165
        %v1167 = vsub.s32 4294967266, %v1162
        %v1168 = vadd.s32 %v1167, 127
        %v1169 = vshll.u32 %v1168, 23
        %v1170 = vor.u32 4788187, %v1169
        %v1171 = vand.u32 2147483647, %v1170
        %v1173 = vcvt.s32.f32 %v1166
        %v1174 = vmul.f32 %v1173, %v1171
        %v1175 = vxor.u32 %v1174, 2147483648
        %v1176 = vsel %vm1093, %v1175, %v1174
        %v1177 = vsub.s32 4, %v1153
        %v1178 = vsel %vm1093, %v1177, %v1153
        %v1179 = vsel %vm1092, %v237, %v1176
        %v1180 = vsel %vm1092, 0, %v1178
        %v1181 = vcosq.f32.pop %v1179
        %v1182 = vsinq.f32.pop %v1179
        %vm1183 = vweird.f32 %v237
        %v1184 = vand.u32 %v1180, 3
        %vm1185 = vcmp.lt.s32.totalorder %v1184, 2
        %vm1186 = vcmp.eq.s32.totalorder %v1184, 0
        %v1187 = vxor.u32 %v1182, 2147483648
        %v1188 = vsel %vm1186, %v1181, %v1187
        %vm1189 = vcmp.eq.s32.totalorder %v1184, 2
        %v1190 = vxor.u32 %v1181, 2147483648
        %v1191 = vsel %vm1189, %v1190, %v1182
        %v1192 = vsel %vm1185, %v1188, %v1191
        %v1193 = vsel %vm1183, nan, %v1192
        %v1194 = vand.u32 2147483647, %v239
        %vm1195 = vcmp.le.f32.partialorder %v1194, 0.7853982
        %vm1196 = vcmp.lt.s32.totalorder %v239, 0
        %v1197 = vand.u32 %v239, 2139095040
        %v1198 = vshrl.u32 %v1197, 23
        %v1199 = vsub.s32 %v1198, 127
        %v1200 = vand.u32 2147483647, %v239
        %v1201 = vand.u32 %v1200, 8388607
        %v1202 = vor.u32 %v1201, 8388608
        %v1203 = vsub.s32 0, %v1202
        %v1204 = vadd.s32 %v1199, 1
        %vm1205 = vcmp.gt.s32.totalorder %v1204, 0
        %v1206 = vsel %vm1205, %v1204, 0
        %v1207 = vshrl.u32 %v1206, 5
        %v1208 = vand.u32 %v1206, 31
        %v1209 = vsub.s32 32, %v1208
        %v1210 = vshrl.u32 683565275, %v1209
        %v1211 = vshll.u32 683565275, %v1208
        %v1212 = vshrl.u32 2475754826, %v1209
        %v1213 = vor.u32 %v1211, %v1212
        %v1214 = vshll.u32 2475754826, %v1208
        %v1215 = vshrl.u32 2131351028, %v1209
        %v1216 = vor.u32 %v1214, %v1215
        %v1217 = vshll.u32 2131351028, %v1208
        %v1218 = vshrl.u32 2102212464, %v1209
        %v1219 = vor.u32 %v1217, %v1218
        %v1220 = vshll.u32 2102212464, %v1208
        %v1221 = vshrl.u32 920167782, %v1209
        %v1222 = vor.u32 %v1220, %v1221
        %v1223 = vshll.u32 920167782, %v1208
        %v1224 = vshrl.u32 1326507024, %v1209
        %v1225 = vor.u32 %v1223, %v1224
        %vm1226 = vcmp.lt.s32.totalorder %v1207, 1
        %vm1227 = vcmp.lt.s32.totalorder %v1207, 2
        %vm1228 = vcmp.lt.s32.totalorder %v1207, 3
        %vm1229 = vcmp.lt.s32.totalorder %v1207, 4
        %v1230 = vsel %vm1226, %v1210, %v1213
        %v1231 = vsel %vm1229, %v1219, 2102212464
        %v1232 = vsel %vm1228, %v1216, %v1231
        %v1233 = vsel %vm1227, %v1230, %v1232
        %v1234 = vsel %vm1226, %v1213, %v1216
        %v1235 = vsel %vm1229, %v1222, 920167782
        %v1236 = vsel %vm1228, %v1219, %v1235
        %v1237 = vsel %vm1227, %v1234, %v1236
        %v1238 = vsel %vm1226, %v1216, %v1219
        %v1239 = vsel %vm1229, %v1225, 1326507024
        %v1240 = vsel %vm1228, %v1222, %v1239
        %v1241 = vsel %vm1227, %v1238, %v1240
        %v1242 = vshll.u32 %v1202, 8
        %v1243 = vmul.u32.u64.compose %v1242, %v1241
        %v1244 = vextract.low.u32 %v1243
        %v1245 = vextract.high.u32 %v1243
        %v1246 = vmul.u32.u64.compose %v1242, %v1237
        %v1247 = vextract.low.u32 %v1246
        %v1248 = vextract.high.u32 %v1246
        %v1249 = vmul.u32 %v1242, %v1233
        %v1250 = vadd.s32 %v1245, %v1247
        %vm1251 = vc.u32 %v1245, %v1247
        %v1252 = vadd.s32 %v1248, 1
        %v1253 = vsel %vm1251, %v1252, %v1248
        %v1254 = vadd.s32 %v1249, %v1253
        %v1255 = vadd.s32 %v1254, 536870912
        %v1256 = vshrl.u32 %v1255, 30
        %v1257 = vshll.u32 %v1256, 30
        %v1258 = vsub.s32 %v1254, %v1257
        %vm1259 = vcmp.lt.s32.totalorder %v1258, 0
        %v1260 = vsub.s32 0, %v1258
        %v1261 = vsel %vm1259, %v1260, %v1258
        %v1262 = vclz %v1261
        %v1263 = vsub.s32 %v1262, 2
        %vm1264 = vcmp.gt.s32.totalorder 0, %v1263
        %v1265 = vsel %vm1264, 0, %v1263
        %v1266 = vsub.s32 32, %v1265
        %v1267 = vshll.u32 %v1258, %v1265
        %v1268 = vshrl.u32 %v1250, %v1266
        %v1269 = vor.u32 %v1267, %v1268
        %v1270 = vsub.s32 4294967266, %v1265
        %v1271 = vadd.s32 %v1270, 127
        %v1272 = vshll.u32 %v1271, 23
        %v1273 = vor.u32 4788187, %v1272
        %v1274 = vand.u32 2147483647, %v1273
        %v1276 = vcvt.s32.f32 %v1269
        %v1277 = vmul.f32 %v1276, %v1274
        %v1278 = vxor.u32 %v1277, 2147483648
        %v1279 = vsel %vm1196, %v1278, %v1277
        %v1280 = vsub.s32 4, %v1256
        %v1281 = vsel %vm1196, %v1280, %v1256
        %v1282 = vsel %vm1195, %v239, %v1279
        %v1283 = vsel %vm1195, 0, %v1281
        %v1284 = vcosq.f32.pop %v1282
        %v1285 = vsinq.f32.pop %v1282
        %vm1286 = vweird.f32 %v239
        %v1287 = vand.u32 %v1283, 3
        %vm1288 = vcmp.lt.s32.totalorder %v1287, 2
        %vm1289 = vcmp.eq.s32.totalorder %v1287, 0
        %v1290 = vxor.u32 %v1285, 2147483648
        %v1291 = vsel %vm1289, %v1284, %v1290
        %vm1292 = vcmp.eq.s32.totalorder %v1287, 2
        %v1293 = vxor.u32 %v1284, 2147483648
        %v1294 = vsel %vm1292, %v1293, %v1285
        %v1295 = vsel %vm1288, %v1291, %v1294
        %v1296 = vsel %vm1286, nan, %v1295
        %v1297 = vand.u32 2147483647, %v243
        %vm1298 = vcmp.le.f32.partialorder %v1297, 0.7853982
        %vm1299 = vcmp.lt.s32.totalorder %v243, 0
        %v1300 = vand.u32 %v243, 2139095040
        %v1301 = vshrl.u32 %v1300, 23
        %v1302 = vsub.s32 %v1301, 127
        %v1303 = vand.u32 2147483647, %v243
        %v1304 = vand.u32 %v1303, 8388607
        %v1305 = vor.u32 %v1304, 8388608
        %v1306 = vsub.s32 0, %v1305
        %v1307 = vadd.s32 %v1302, 1
        %vm1308 = vcmp.gt.s32.totalorder %v1307, 0
        %v1309 = vsel %vm1308, %v1307, 0
        %v1310 = vshrl.u32 %v1309, 5
        %v1311 = vand.u32 %v1309, 31
        %v1312 = vsub.s32 32, %v1311
        %v1313 = vshrl.u32 683565275, %v1312
        %v1314 = vshll.u32 683565275, %v1311
        %v1315 = vshrl.u32 2475754826, %v1312
        %v1316 = vor.u32 %v1314, %v1315
        %v1317 = vshll.u32 2475754826, %v1311
        %v1318 = vshrl.u32 2131351028, %v1312
        %v1319 = vor.u32 %v1317, %v1318
        %v1320 = vshll.u32 2131351028, %v1311
        %v1321 = vshrl.u32 2102212464, %v1312
        %v1322 = vor.u32 %v1320, %v1321
        %v1323 = vshll.u32 2102212464, %v1311
        %v1324 = vshrl.u32 920167782, %v1312
        %v1325 = vor.u32 %v1323, %v1324
        %v1326 = vshll.u32 920167782, %v1311
        %v1327 = vshrl.u32 1326507024, %v1312
        %v1328 = vor.u32 %v1326, %v1327
        %vm1329 = vcmp.lt.s32.totalorder %v1310, 1
        %vm1330 = vcmp.lt.s32.totalorder %v1310, 2
        %vm1331 = vcmp.lt.s32.totalorder %v1310, 3
        %vm1332 = vcmp.lt.s32.totalorder %v1310, 4
        %v1333 = vsel %vm1329, %v1313, %v1316
        %v1334 = vsel %vm1332, %v1322, 2102212464
        %v1335 = vsel %vm1331, %v1319, %v1334
        %v1336 = vsel %vm1330, %v1333, %v1335
        %v1337 = vsel %vm1329, %v1316, %v1319
        %v1338 = vsel %vm1332, %v1325, 920167782
        %v1339 = vsel %vm1331, %v1322, %v1338
        %v1340 = vsel %vm1330, %v1337, %v1339
        %v1341 = vsel %vm1329, %v1319, %v1322
        %v1342 = vsel %vm1332, %v1328, 1326507024
        %v1343 = vsel %vm1331, %v1325, %v1342
        %v1344 = vsel %vm1330, %v1341, %v1343
        %v1345 = vshll.u32 %v1305, 8
        %v1346 = vmul.u32.u64.compose %v1345, %v1344
        %v1347 = vextract.low.u32 %v1346
        %v1348 = vextract.high.u32 %v1346
        %v1349 = vmul.u32.u64.compose %v1345, %v1340
        %v1350 = vextract.low.u32 %v1349
        %v1351 = vextract.high.u32 %v1349
        %v1352 = vmul.u32 %v1345, %v1336
        %v1353 = vadd.s32 %v1348, %v1350
        %vm1354 = vc.u32 %v1348, %v1350
        %v1355 = vadd.s32 %v1351, 1
        %v1356 = vsel %vm1354, %v1355, %v1351
        %v1357 = vadd.s32 %v1352, %v1356
        %v1358 = vadd.s32 %v1357, 536870912
        %v1359 = vshrl.u32 %v1358, 30
        %v1360 = vshll.u32 %v1359, 30
        %v1361 = vsub.s32 %v1357, %v1360
        %vm1362 = vcmp.lt.s32.totalorder %v1361, 0
        %v1363 = vsub.s32 0, %v1361
        %v1364 = vsel %vm1362, %v1363, %v1361
        %v1365 = vclz %v1364
        %v1366 = vsub.s32 %v1365, 2
        %vm1367 = vcmp.gt.s32.totalorder 0, %v1366
        %v1368 = vsel %vm1367, 0, %v1366
        %v1369 = vsub.s32 32, %v1368
        %v1370 = vshll.u32 %v1361, %v1368
        %v1371 = vshrl.u32 %v1353, %v1369
        %v1372 = vor.u32 %v1370, %v1371
        %v1373 = vsub.s32 4294967266, %v1368
        %v1374 = vadd.s32 %v1373, 127
        %v1375 = vshll.u32 %v1374, 23
        %v1376 = vor.u32 4788187, %v1375
        %v1377 = vand.u32 2147483647, %v1376
        %v1379 = vcvt.s32.f32 %v1372
        %v1380 = vmul.f32 %v1379, %v1377
        %v1381 = vxor.u32 %v1380, 2147483648
        %v1382 = vsel %vm1299, %v1381, %v1380
        %v1383 = vsub.s32 4, %v1359
        %v1384 = vsel %vm1299, %v1383, %v1359
        %v1385 = vsel %vm1298, %v243, %v1382
        %v1386 = vsel %vm1298, 0, %v1384
        %v1387 = vcosq.f32.pop %v1385
        %v1388 = vsinq.f32.pop %v1385
        %vm1389 = vweird.f32 %v243
        %v1390 = vand.u32 %v1386, 3
        %vm1391 = vcmp.lt.s32.totalorder %v1390, 2
        %vm1392 = vcmp.eq.s32.totalorder %v1390, 0
        %v1393 = vxor.u32 %v1388, 2147483648
        %v1394 = vsel %vm1392, %v1387, %v1393
        %vm1395 = vcmp.eq.s32.totalorder %v1390, 2
        %v1396 = vxor.u32 %v1387, 2147483648
        %v1397 = vsel %vm1395, %v1396, %v1388
        %v1398 = vsel %vm1391, %v1394, %v1397
        %v1399 = vsel %vm1389, nan, %v1398
        %v1400 = vand.u32 2147483647, %v245
        %vm1401 = vcmp.le.f32.partialorder %v1400, 0.7853982
        %vm1402 = vcmp.lt.s32.totalorder %v245, 0
        %v1403 = vand.u32 %v245, 2139095040
        %v1404 = vshrl.u32 %v1403, 23
        %v1405 = vsub.s32 %v1404, 127
        %v1406 = vand.u32 2147483647, %v245
        %v1407 = vand.u32 %v1406, 8388607
        %v1408 = vor.u32 %v1407, 8388608
        %v1409 = vsub.s32 0, %v1408
        %v1410 = vadd.s32 %v1405, 1
        %vm1411 = vcmp.gt.s32.totalorder %v1410, 0
        %v1412 = vsel %vm1411, %v1410, 0
        %v1413 = vshrl.u32 %v1412, 5
        %v1414 = vand.u32 %v1412, 31
        %v1415 = vsub.s32 32, %v1414
        %v1416 = vshrl.u32 683565275, %v1415
        %v1417 = vshll.u32 683565275, %v1414
        %v1418 = vshrl.u32 2475754826, %v1415
        %v1419 = vor.u32 %v1417, %v1418
        %v1420 = vshll.u32 2475754826, %v1414
        %v1421 = vshrl.u32 2131351028, %v1415
        %v1422 = vor.u32 %v1420, %v1421
        %v1423 = vshll.u32 2131351028, %v1414
        %v1424 = vshrl.u32 2102212464, %v1415
        %v1425 = vor.u32 %v1423, %v1424
        %v1426 = vshll.u32 2102212464, %v1414
        %v1427 = vshrl.u32 920167782, %v1415
        %v1428 = vor.u32 %v1426, %v1427
        %v1429 = vshll.u32 920167782, %v1414
        %v1430 = vshrl.u32 1326507024, %v1415
        %v1431 = vor.u32 %v1429, %v1430
        %vm1432 = vcmp.lt.s32.totalorder %v1413, 1
        %vm1433 = vcmp.lt.s32.totalorder %v1413, 2
        %vm1434 = vcmp.lt.s32.totalorder %v1413, 3
        %vm1435 = vcmp.lt.s32.totalorder %v1413, 4
        %v1436 = vsel %vm1432, %v1416, %v1419
        %v1437 = vsel %vm1435, %v1425, 2102212464
        %v1438 = vsel %vm1434, %v1422, %v1437
        %v1439 = vsel %vm1433, %v1436, %v1438
        %v1440 = vsel %vm1432, %v1419, %v1422
        %v1441 = vsel %vm1435, %v1428, 920167782
        %v1442 = vsel %vm1434, %v1425, %v1441
        %v1443 = vsel %vm1433, %v1440, %v1442
        %v1444 = vsel %vm1432, %v1422, %v1425
        %v1445 = vsel %vm1435, %v1431, 1326507024
        %v1446 = vsel %vm1434, %v1428, %v1445
        %v1447 = vsel %vm1433, %v1444, %v1446
        %v1448 = vshll.u32 %v1408, 8
        %v1449 = vmul.u32.u64.compose %v1448, %v1447
        %v1450 = vextract.low.u32 %v1449
        %v1451 = vextract.high.u32 %v1449
        %v1452 = vmul.u32.u64.compose %v1448, %v1443
        %v1453 = vextract.low.u32 %v1452
        %v1454 = vextract.high.u32 %v1452
        %v1455 = vmul.u32 %v1448, %v1439
        %v1456 = vadd.s32 %v1451, %v1453
        %vm1457 = vc.u32 %v1451, %v1453
        %v1458 = vadd.s32 %v1454, 1
        %v1459 = vsel %vm1457, %v1458, %v1454
        %v1460 = vadd.s32 %v1455, %v1459
        %v1461 = vadd.s32 %v1460, 536870912
        %v1462 = vshrl.u32 %v1461, 30
        %v1463 = vshll.u32 %v1462, 30
        %v1464 = vsub.s32 %v1460, %v1463
        %vm1465 = vcmp.lt.s32.totalorder %v1464, 0
        %v1466 = vsub.s32 0, %v1464
        %v1467 = vsel %vm1465, %v1466, %v1464
        %v1468 = vclz %v1467
        %v1469 = vsub.s32 %v1468, 2
        %vm1470 = vcmp.gt.s32.totalorder 0, %v1469
        %v1471 = vsel %vm1470, 0, %v1469
        %v1472 = vsub.s32 32, %v1471
        %v1473 = vshll.u32 %v1464, %v1471
        %v1474 = vshrl.u32 %v1456, %v1472
        %v1475 = vor.u32 %v1473, %v1474
        %v1476 = vsub.s32 4294967266, %v1471
        %v1477 = vadd.s32 %v1476, 127
        %v1478 = vshll.u32 %v1477, 23
        %v1479 = vor.u32 4788187, %v1478
        %v1480 = vand.u32 2147483647, %v1479
        %v1482 = vcvt.s32.f32 %v1475
        %v1483 = vmul.f32 %v1482, %v1480
        %v1484 = vxor.u32 %v1483, 2147483648
        %v1485 = vsel %vm1402, %v1484, %v1483
        %v1486 = vsub.s32 4, %v1462
        %v1487 = vsel %vm1402, %v1486, %v1462
        %v1488 = vsel %vm1401, %v245, %v1485
        %v1489 = vsel %vm1401, 0, %v1487
        %v1490 = vcosq.f32.pop %v1488
        %v1491 = vsinq.f32.pop %v1488
        %vm1492 = vweird.f32 %v245
        %v1493 = vand.u32 %v1489, 3
        %vm1494 = vcmp.lt.s32.totalorder %v1493, 2
        %vm1495 = vcmp.eq.s32.totalorder %v1493, 0
        %v1496 = vxor.u32 %v1491, 2147483648
        %v1497 = vsel %vm1495, %v1490, %v1496
        %vm1498 = vcmp.eq.s32.totalorder %v1493, 2
        %v1499 = vxor.u32 %v1490, 2147483648
        %v1500 = vsel %vm1498, %v1499, %v1491
        %v1501 = vsel %vm1494, %v1497, %v1500
        %v1502 = vsel %vm1492, nan, %v1501
        %v1503 = vand.u32 2147483647, %v249
        %vm1504 = vcmp.le.f32.partialorder %v1503, 0.7853982
        %vm1505 = vcmp.lt.s32.totalorder %v249, 0
        %v1506 = vand.u32 %v249, 2139095040
        %v1507 = vshrl.u32 %v1506, 23
        %v1508 = vsub.s32 %v1507, 127
        %v1509 = vand.u32 2147483647, %v249
        %v1510 = vand.u32 %v1509, 8388607
        %v1511 = vor.u32 %v1510, 8388608
        %v1512 = vsub.s32 0, %v1511
        %v1513 = vadd.s32 %v1508, 1
        %vm1514 = vcmp.gt.s32.totalorder %v1513, 0
        %v1515 = vsel %vm1514, %v1513, 0
        %v1516 = vshrl.u32 %v1515, 5
        %v1517 = vand.u32 %v1515, 31
        %v1518 = vsub.s32 32, %v1517
        %v1519 = vshrl.u32 683565275, %v1518
        %v1520 = vshll.u32 683565275, %v1517
        %v1521 = vshrl.u32 2475754826, %v1518
        %v1522 = vor.u32 %v1520, %v1521
        %v1523 = vshll.u32 2475754826, %v1517
        %v1524 = vshrl.u32 2131351028, %v1518
        %v1525 = vor.u32 %v1523, %v1524
        %v1526 = vshll.u32 2131351028, %v1517
        %v1527 = vshrl.u32 2102212464, %v1518
        %v1528 = vor.u32 %v1526, %v1527
        %v1529 = vshll.u32 2102212464, %v1517
        %v1530 = vshrl.u32 920167782, %v1518
        %v1531 = vor.u32 %v1529, %v1530
        %v1532 = vshll.u32 920167782, %v1517
        %v1533 = vshrl.u32 1326507024, %v1518
        %v1534 = vor.u32 %v1532, %v1533
        %vm1535 = vcmp.lt.s32.totalorder %v1516, 1
        %vm1536 = vcmp.lt.s32.totalorder %v1516, 2
        %vm1537 = vcmp.lt.s32.totalorder %v1516, 3
        %vm1538 = vcmp.lt.s32.totalorder %v1516, 4
        %v1539 = vsel %vm1535, %v1519, %v1522
        %v1540 = vsel %vm1538, %v1528, 2102212464
        %v1541 = vsel %vm1537, %v1525, %v1540
        %v1542 = vsel %vm1536, %v1539, %v1541
        %v1543 = vsel %vm1535, %v1522, %v1525
        %v1544 = vsel %vm1538, %v1531, 920167782
        %v1545 = vsel %vm1537, %v1528, %v1544
        %v1546 = vsel %vm1536, %v1543, %v1545
        %v1547 = vsel %vm1535, %v1525, %v1528
        %v1548 = vsel %vm1538, %v1534, 1326507024
        %v1549 = vsel %vm1537, %v1531, %v1548
        %v1550 = vsel %vm1536, %v1547, %v1549
        %v1551 = vshll.u32 %v1511, 8
        %v1552 = vmul.u32.u64.compose %v1551, %v1550
        %v1553 = vextract.low.u32 %v1552
        %v1554 = vextract.high.u32 %v1552
        %v1555 = vmul.u32.u64.compose %v1551, %v1546
        %v1556 = vextract.low.u32 %v1555
        %v1557 = vextract.high.u32 %v1555
        %v1558 = vmul.u32 %v1551, %v1542
        %v1559 = vadd.s32 %v1554, %v1556
        %vm1560 = vc.u32 %v1554, %v1556
        %v1561 = vadd.s32 %v1557, 1
        %v1562 = vsel %vm1560, %v1561, %v1557
        %v1563 = vadd.s32 %v1558, %v1562
        %v1564 = vadd.s32 %v1563, 536870912
        %v1565 = vshrl.u32 %v1564, 30
        %v1566 = vshll.u32 %v1565, 30
        %v1567 = vsub.s32 %v1563, %v1566
        %vm1568 = vcmp.lt.s32.totalorder %v1567, 0
        %v1569 = vsub.s32 0, %v1567
        %v1570 = vsel %vm1568, %v1569, %v1567
        %v1571 = vclz %v1570
        %v1572 = vsub.s32 %v1571, 2
        %vm1573 = vcmp.gt.s32.totalorder 0, %v1572
        %v1574 = vsel %vm1573, 0, %v1572
        %v1575 = vsub.s32 32, %v1574
        %v1576 = vshll.u32 %v1567, %v1574
        %v1577 = vshrl.u32 %v1559, %v1575
        %v1578 = vor.u32 %v1576, %v1577
        %v1579 = vsub.s32 4294967266, %v1574
        %v1580 = vadd.s32 %v1579, 127
        %v1581 = vshll.u32 %v1580, 23
        %v1582 = vor.u32 4788187, %v1581
        %v1583 = vand.u32 2147483647, %v1582
        %v1585 = vcvt.s32.f32 %v1578
        %v1586 = vmul.f32 %v1585, %v1583
        %v1587 = vxor.u32 %v1586, 2147483648
        %v1588 = vsel %vm1505, %v1587, %v1586
        %v1589 = vsub.s32 4, %v1565
        %v1590 = vsel %vm1505, %v1589, %v1565
        %v1591 = vsel %vm1504, %v249, %v1588
        %v1592 = vsel %vm1504, 0, %v1590
        %v1593 = vcosq.f32.pop %v1591
        %v1594 = vsinq.f32.pop %v1591
        %vm1595 = vweird.f32 %v249
        %v1596 = vand.u32 %v1592, 3
        %vm1597 = vcmp.lt.s32.totalorder %v1596, 2
        %vm1598 = vcmp.eq.s32.totalorder %v1596, 0
        %v1599 = vxor.u32 %v1594, 2147483648
        %v1600 = vsel %vm1598, %v1593, %v1599
        %vm1601 = vcmp.eq.s32.totalorder %v1596, 2
        %v1602 = vxor.u32 %v1593, 2147483648
        %v1603 = vsel %vm1601, %v1602, %v1594
        %v1604 = vsel %vm1597, %v1600, %v1603
        %v1605 = vsel %vm1595, nan, %v1604
        %v1606 = vand.u32 2147483647, %v251
        %vm1607 = vcmp.le.f32.partialorder %v1606, 0.7853982
        %vm1608 = vcmp.lt.s32.totalorder %v251, 0
        %v1609 = vand.u32 %v251, 2139095040
        %v1610 = vshrl.u32 %v1609, 23
        %v1611 = vsub.s32 %v1610, 127
        %v1612 = vand.u32 2147483647, %v251
        %v1613 = vand.u32 %v1612, 8388607
        %v1614 = vor.u32 %v1613, 8388608
        %v1615 = vsub.s32 0, %v1614
        %v1616 = vadd.s32 %v1611, 1
        %vm1617 = vcmp.gt.s32.totalorder %v1616, 0
        %v1618 = vsel %vm1617, %v1616, 0
        %v1619 = vshrl.u32 %v1618, 5
        %v1620 = vand.u32 %v1618, 31
        %v1621 = vsub.s32 32, %v1620
        %v1622 = vshrl.u32 683565275, %v1621
        %v1623 = vshll.u32 683565275, %v1620
        %v1624 = vshrl.u32 2475754826, %v1621
        %v1625 = vor.u32 %v1623, %v1624
        %v1626 = vshll.u32 2475754826, %v1620
        %v1627 = vshrl.u32 2131351028, %v1621
        %v1628 = vor.u32 %v1626, %v1627
        %v1629 = vshll.u32 2131351028, %v1620
        %v1630 = vshrl.u32 2102212464, %v1621
        %v1631 = vor.u32 %v1629, %v1630
        %v1632 = vshll.u32 2102212464, %v1620
        %v1633 = vshrl.u32 920167782, %v1621
        %v1634 = vor.u32 %v1632, %v1633
        %v1635 = vshll.u32 920167782, %v1620
        %v1636 = vshrl.u32 1326507024, %v1621
        %v1637 = vor.u32 %v1635, %v1636
        %vm1638 = vcmp.lt.s32.totalorder %v1619, 1
        %vm1639 = vcmp.lt.s32.totalorder %v1619, 2
        %vm1640 = vcmp.lt.s32.totalorder %v1619, 3
        %vm1641 = vcmp.lt.s32.totalorder %v1619, 4
        %v1642 = vsel %vm1638, %v1622, %v1625
        %v1643 = vsel %vm1641, %v1631, 2102212464
        %v1644 = vsel %vm1640, %v1628, %v1643
        %v1645 = vsel %vm1639, %v1642, %v1644
        %v1646 = vsel %vm1638, %v1625, %v1628
        %v1647 = vsel %vm1641, %v1634, 920167782
        %v1648 = vsel %vm1640, %v1631, %v1647
        %v1649 = vsel %vm1639, %v1646, %v1648
        %v1650 = vsel %vm1638, %v1628, %v1631
        %v1651 = vsel %vm1641, %v1637, 1326507024
        %v1652 = vsel %vm1640, %v1634, %v1651
        %v1653 = vsel %vm1639, %v1650, %v1652
        %v1654 = vshll.u32 %v1614, 8
        %v1655 = vmul.u32.u64.compose %v1654, %v1653
        %v1656 = vextract.low.u32 %v1655
        %v1657 = vextract.high.u32 %v1655
        %v1658 = vmul.u32.u64.compose %v1654, %v1649
        %v1659 = vextract.low.u32 %v1658
        %v1660 = vextract.high.u32 %v1658
        %v1661 = vmul.u32 %v1654, %v1645
        %v1662 = vadd.s32 %v1657, %v1659
        %vm1663 = vc.u32 %v1657, %v1659
        %v1664 = vadd.s32 %v1660, 1
        %v1665 = vsel %vm1663, %v1664, %v1660
        %v1666 = vadd.s32 %v1661, %v1665
        %v1667 = vadd.s32 %v1666, 536870912
        %v1668 = vshrl.u32 %v1667, 30
        %v1669 = vshll.u32 %v1668, 30
        %v1670 = vsub.s32 %v1666, %v1669
        %vm1671 = vcmp.lt.s32.totalorder %v1670, 0
        %v1672 = vsub.s32 0, %v1670
        %v1673 = vsel %vm1671, %v1672, %v1670
        %v1674 = vclz %v1673
        %v1675 = vsub.s32 %v1674, 2
        %vm1676 = vcmp.gt.s32.totalorder 0, %v1675
        %v1677 = vsel %vm1676, 0, %v1675
        %v1678 = vsub.s32 32, %v1677
        %v1679 = vshll.u32 %v1670, %v1677
        %v1680 = vshrl.u32 %v1662, %v1678
        %v1681 = vor.u32 %v1679, %v1680
        %v1682 = vsub.s32 4294967266, %v1677
        %v1683 = vadd.s32 %v1682, 127
        %v1684 = vshll.u32 %v1683, 23
        %v1685 = vor.u32 4788187, %v1684
        %v1686 = vand.u32 2147483647, %v1685
        %v1688 = vcvt.s32.f32 %v1681
        %v1689 = vmul.f32 %v1688, %v1686
        %v1690 = vxor.u32 %v1689, 2147483648
        %v1691 = vsel %vm1608, %v1690, %v1689
        %v1692 = vsub.s32 4, %v1668
        %v1693 = vsel %vm1608, %v1692, %v1668
        %v1694 = vsel %vm1607, %v251, %v1691
        %v1695 = vsel %vm1607, 0, %v1693
        %v1696 = vcosq.f32.pop %v1694
        %v1697 = vsinq.f32.pop %v1694
        %vm1698 = vweird.f32 %v251
        %v1699 = vand.u32 %v1695, 3
        %vm1700 = vcmp.lt.s32.totalorder %v1699, 2
        %vm1701 = vcmp.eq.s32.totalorder %v1699, 0
        %v1702 = vxor.u32 %v1697, 2147483648
        %v1703 = vsel %vm1701, %v1696, %v1702
        %vm1704 = vcmp.eq.s32.totalorder %v1699, 2
        %v1705 = vxor.u32 %v1696, 2147483648
        %v1706 = vsel %vm1704, %v1705, %v1697
        %v1707 = vsel %vm1700, %v1703, %v1706
        %v1708 = vsel %vm1698, nan, %v1707
        %v1709 = vand.u32 2147483647, %v255
        %vm1710 = vcmp.le.f32.partialorder %v1709, 0.7853982
        %vm1711 = vcmp.lt.s32.totalorder %v255, 0
        %v1712 = vand.u32 %v255, 2139095040
        %v1713 = vshrl.u32 %v1712, 23
        %v1714 = vsub.s32 %v1713, 127
        %v1715 = vand.u32 2147483647, %v255
        %v1716 = vand.u32 %v1715, 8388607
        %v1717 = vor.u32 %v1716, 8388608
        %v1718 = vsub.s32 0, %v1717
        %v1719 = vadd.s32 %v1714, 1
        %vm1720 = vcmp.gt.s32.totalorder %v1719, 0
        %v1721 = vsel %vm1720, %v1719, 0
        %v1722 = vshrl.u32 %v1721, 5
        %v1723 = vand.u32 %v1721, 31
        %v1724 = vsub.s32 32, %v1723
        %v1725 = vshrl.u32 683565275, %v1724
        %v1726 = vshll.u32 683565275, %v1723
        %v1727 = vshrl.u32 2475754826, %v1724
        %v1728 = vor.u32 %v1726, %v1727
        %v1729 = vshll.u32 2475754826, %v1723
        %v1730 = vshrl.u32 2131351028, %v1724
        %v1731 = vor.u32 %v1729, %v1730
        %v1732 = vshll.u32 2131351028, %v1723
        %v1733 = vshrl.u32 2102212464, %v1724
        %v1734 = vor.u32 %v1732, %v1733
        %v1735 = vshll.u32 2102212464, %v1723
        %v1736 = vshrl.u32 920167782, %v1724
        %v1737 = vor.u32 %v1735, %v1736
        %v1738 = vshll.u32 920167782, %v1723
        %v1739 = vshrl.u32 1326507024, %v1724
        %v1740 = vor.u32 %v1738, %v1739
        %vm1741 = vcmp.lt.s32.totalorder %v1722, 1
        %vm1742 = vcmp.lt.s32.totalorder %v1722, 2
        %vm1743 = vcmp.lt.s32.totalorder %v1722, 3
        %vm1744 = vcmp.lt.s32.totalorder %v1722, 4
        %v1745 = vsel %vm1741, %v1725, %v1728
        %v1746 = vsel %vm1744, %v1734, 2102212464
        %v1747 = vsel %vm1743, %v1731, %v1746
        %v1748 = vsel %vm1742, %v1745, %v1747
        %v1749 = vsel %vm1741, %v1728, %v1731
        %v1750 = vsel %vm1744, %v1737, 920167782
        %v1751 = vsel %vm1743, %v1734, %v1750
        %v1752 = vsel %vm1742, %v1749, %v1751
        %v1753 = vsel %vm1741, %v1731, %v1734
        %v1754 = vsel %vm1744, %v1740, 1326507024
        %v1755 = vsel %vm1743, %v1737, %v1754
        %v1756 = vsel %vm1742, %v1753, %v1755
        %v1757 = vshll.u32 %v1717, 8
        %v1758 = vmul.u32.u64.compose %v1757, %v1756
        %v1759 = vextract.low.u32 %v1758
        %v1760 = vextract.high.u32 %v1758
        %v1761 = vmul.u32.u64.compose %v1757, %v1752
        %v1762 = vextract.low.u32 %v1761
        %v1763 = vextract.high.u32 %v1761
        %v1764 = vmul.u32 %v1757, %v1748
        %v1765 = vadd.s32 %v1760, %v1762
        %vm1766 = vc.u32 %v1760, %v1762
        %v1767 = vadd.s32 %v1763, 1
        %v1768 = vsel %vm1766, %v1767, %v1763
        %v1769 = vadd.s32 %v1764, %v1768
        %v1770 = vadd.s32 %v1769, 536870912
        %v1771 = vshrl.u32 %v1770, 30
        %v1772 = vshll.u32 %v1771, 30
        %v1773 = vsub.s32 %v1769, %v1772
        %vm1774 = vcmp.lt.s32.totalorder %v1773, 0
        %v1775 = vsub.s32 0, %v1773
        %v1776 = vsel %vm1774, %v1775, %v1773
        %v1777 = vclz %v1776
        %v1778 = vsub.s32 %v1777, 2
        %vm1779 = vcmp.gt.s32.totalorder 0, %v1778
        %v1780 = vsel %vm1779, 0, %v1778
        %v1781 = vsub.s32 32, %v1780
        %v1782 = vshll.u32 %v1773, %v1780
        %v1783 = vshrl.u32 %v1765, %v1781
        %v1784 = vor.u32 %v1782, %v1783
        %v1785 = vsub.s32 4294967266, %v1780
        %v1786 = vadd.s32 %v1785, 127
        %v1787 = vshll.u32 %v1786, 23
        %v1788 = vor.u32 4788187, %v1787
        %v1789 = vand.u32 2147483647, %v1788
        %v1791 = vcvt.s32.f32 %v1784
        %v1792 = vmul.f32 %v1791, %v1789
        %v1793 = vxor.u32 %v1792, 2147483648
        %v1794 = vsel %vm1711, %v1793, %v1792
        %v1795 = vsub.s32 4, %v1771
        %v1796 = vsel %vm1711, %v1795, %v1771
        %v1797 = vsel %vm1710, %v255, %v1794
        %v1798 = vsel %vm1710, 0, %v1796
        %v1799 = vcosq.f32.pop %v1797
        %v1800 = vsinq.f32.pop %v1797
        %vm1801 = vweird.f32 %v255
        %v1802 = vand.u32 %v1798, 3
        %vm1803 = vcmp.lt.s32.totalorder %v1802, 2
        %vm1804 = vcmp.eq.s32.totalorder %v1802, 0
        %v1805 = vxor.u32 %v1800, 2147483648
        %v1806 = vsel %vm1804, %v1799, %v1805
        %vm1807 = vcmp.eq.s32.totalorder %v1802, 2
        %v1808 = vxor.u32 %v1799, 2147483648
        %v1809 = vsel %vm1807, %v1808, %v1800
        %v1810 = vsel %vm1803, %v1806, %v1809
        %v1811 = vsel %vm1801, nan, %v1810
        %v1812 = vand.u32 2147483647, %v257
        %vm1813 = vcmp.le.f32.partialorder %v1812, 0.7853982
        %vm1814 = vcmp.lt.s32.totalorder %v257, 0
        %v1815 = vand.u32 %v257, 2139095040
        %v1816 = vshrl.u32 %v1815, 23
        %v1817 = vsub.s32 %v1816, 127
        %v1818 = vand.u32 2147483647, %v257
        %v1819 = vand.u32 %v1818, 8388607
        %v1820 = vor.u32 %v1819, 8388608
        %v1821 = vsub.s32 0, %v1820
        %v1822 = vadd.s32 %v1817, 1
        %vm1823 = vcmp.gt.s32.totalorder %v1822, 0
        %v1824 = vsel %vm1823, %v1822, 0
        %v1825 = vshrl.u32 %v1824, 5
        %v1826 = vand.u32 %v1824, 31
        %v1827 = vsub.s32 32, %v1826
        %v1828 = vshrl.u32 683565275, %v1827
        %v1829 = vshll.u32 683565275, %v1826
        %v1830 = vshrl.u32 2475754826, %v1827
        %v1831 = vor.u32 %v1829, %v1830
        %v1832 = vshll.u32 2475754826, %v1826
        %v1833 = vshrl.u32 2131351028, %v1827
        %v1834 = vor.u32 %v1832, %v1833
        %v1835 = vshll.u32 2131351028, %v1826
        %v1836 = vshrl.u32 2102212464, %v1827
        %v1837 = vor.u32 %v1835, %v1836
        %v1838 = vshll.u32 2102212464, %v1826
        %v1839 = vshrl.u32 920167782, %v1827
        %v1840 = vor.u32 %v1838, %v1839
        %v1841 = vshll.u32 920167782, %v1826
        %v1842 = vshrl.u32 1326507024, %v1827
        %v1843 = vor.u32 %v1841, %v1842
        %vm1844 = vcmp.lt.s32.totalorder %v1825, 1
        %vm1845 = vcmp.lt.s32.totalorder %v1825, 2
        %vm1846 = vcmp.lt.s32.totalorder %v1825, 3
        %vm1847 = vcmp.lt.s32.totalorder %v1825, 4
        %v1848 = vsel %vm1844, %v1828, %v1831
        %v1849 = vsel %vm1847, %v1837, 2102212464
        %v1850 = vsel %vm1846, %v1834, %v1849
        %v1851 = vsel %vm1845, %v1848, %v1850
        %v1852 = vsel %vm1844, %v1831, %v1834
        %v1853 = vsel %vm1847, %v1840, 920167782
        %v1854 = vsel %vm1846, %v1837, %v1853
        %v1855 = vsel %vm1845, %v1852, %v1854
        %v1856 = vsel %vm1844, %v1834, %v1837
        %v1857 = vsel %vm1847, %v1843, 1326507024
        %v1858 = vsel %vm1846, %v1840, %v1857
        %v1859 = vsel %vm1845, %v1856, %v1858
        %v1860 = vshll.u32 %v1820, 8
        %v1861 = vmul.u32.u64.compose %v1860, %v1859
        %v1862 = vextract.low.u32 %v1861
        %v1863 = vextract.high.u32 %v1861
        %v1864 = vmul.u32.u64.compose %v1860, %v1855
        %v1865 = vextract.low.u32 %v1864
        %v1866 = vextract.high.u32 %v1864
        %v1867 = vmul.u32 %v1860, %v1851
        %v1868 = vadd.s32 %v1863, %v1865
        %vm1869 = vc.u32 %v1863, %v1865
        %v1870 = vadd.s32 %v1866, 1
        %v1871 = vsel %vm1869, %v1870, %v1866
        %v1872 = vadd.s32 %v1867, %v1871
        %v1873 = vadd.s32 %v1872, 536870912
        %v1874 = vshrl.u32 %v1873, 30
        %v1875 = vshll.u32 %v1874, 30
        %v1876 = vsub.s32 %v1872, %v1875
        %vm1877 = vcmp.lt.s32.totalorder %v1876, 0
        %v1878 = vsub.s32 0, %v1876
        %v1879 = vsel %vm1877, %v1878, %v1876
        %v1880 = vclz %v1879
        %v1881 = vsub.s32 %v1880, 2
        %vm1882 = vcmp.gt.s32.totalorder 0, %v1881
        %v1883 = vsel %vm1882, 0, %v1881
        %v1884 = vsub.s32 32, %v1883
        %v1885 = vshll.u32 %v1876, %v1883
        %v1886 = vshrl.u32 %v1868, %v1884
        %v1887 = vor.u32 %v1885, %v1886
        %v1888 = vsub.s32 4294967266, %v1883
        %v1889 = vadd.s32 %v1888, 127
        %v1890 = vshll.u32 %v1889, 23
        %v1891 = vor.u32 4788187, %v1890
        %v1892 = vand.u32 2147483647, %v1891
        %v1894 = vcvt.s32.f32 %v1887
        %v1895 = vmul.f32 %v1894, %v1892
        %v1896 = vxor.u32 %v1895, 2147483648
        %v1897 = vsel %vm1814, %v1896, %v1895
        %v1898 = vsub.s32 4, %v1874
        %v1899 = vsel %vm1814, %v1898, %v1874
        %v1900 = vsel %vm1813, %v257, %v1897
        %v1901 = vsel %vm1813, 0, %v1899
        %v1902 = vcosq.f32.pop %v1900
        %v1903 = vsinq.f32.pop %v1900
        %vm1904 = vweird.f32 %v257
        %v1905 = vand.u32 %v1901, 3
        %vm1906 = vcmp.lt.s32.totalorder %v1905, 2
        %vm1907 = vcmp.eq.s32.totalorder %v1905, 0
        %v1908 = vxor.u32 %v1903, 2147483648
        %v1909 = vsel %vm1907, %v1902, %v1908
        %vm1910 = vcmp.eq.s32.totalorder %v1905, 2
        %v1911 = vxor.u32 %v1902, 2147483648
        %v1912 = vsel %vm1910, %v1911, %v1903
        %v1913 = vsel %vm1906, %v1909, %v1912
        %v1914 = vsel %vm1904, nan, %v1913
        %1915 = vst [vmem:[%s137] sm:$0xff] %v362
        %1916 = vst [vmem:[%s137 + $0x8] sm:$0xff] %v466
        %1917 = vst [vmem:[%s137 + $0x20] sm:$0xff] %v570
        %1918 = vst [vmem:[%s137 + $0x28] sm:$0xff] %v674
        %1919 = vst [vmem:[%s137 + $0x40] sm:$0xff] %v778
        %1920 = vst [vmem:[%s137 + $0x48] sm:$0xff] %v882
        %1921 = vst [vmem:[%s137 + $0x60] sm:$0xff] %v986
        %1922 = vst [vmem:[%s137 + $0x68] sm:$0xff] %v1090
        %1923 = vst [vmem:[%s137 + $0x10] sm:$0xff] %v1193
        %1924 = vst [vmem:[%s137 + $0x18] sm:$0xff] %v1296
        %1925 = vst [vmem:[%s137 + $0x30] sm:$0xff] %v1399
        %1926 = vst [vmem:[%s137 + $0x38] sm:$0xff] %v1502
        %1927 = vst [vmem:[%s137 + $0x50] sm:$0xff] %v1605
        %1928 = vst [vmem:[%s137 + $0x58] sm:$0xff] %v1708
        %1929 = vst [vmem:[%s137 + $0x70] sm:$0xff] %v1811
        %1930 = vst [vmem:[%s137 + $0x78] sm:$0xff] %v1914
        %s1931 = sand.u32 %s71, 1
        %s1932 = scalar_lea.sflag [#allocation3], %s1931
        %s1933 = sand.u32 %s71, 1
        %s1934 = smul.addr %s1933, 128
        %s1935 = scalar_lea.vmem [#allocation2], %s1934
        // Predicated region
        $region29: #{gaussian_fourier_feature_transform.1} parent=27 // pred_check
          %p1936 = pneg %p81
        $region30: #{gaussian_fourier_feature_transform.1} parent=27 // pred_check_branch
          %1938 = sbr.rel (%p1936) target = $region32
        $region31: #{gaussian_fourier_feature_transform.1} parent=27 // pred_region
          %s1939 = smul.u32 4, %s16
          %s1941 = ssub.s32 2048, 2048
          %1942 = vsyncadd %s1932, %s1941
          %s1943 = smul.addr %s1939, 4
          %s1944 = smul.addr %s1943, 128
          %s1945 = scalar_lea.hbm %s2, %s1944
          %s1946 = sshll.u32 %s1935, 4
          %s1947 = int_to_ptr.vmem [resolvable:$true] %s1946
          %1952 = dma.vmem_to_hbm [thread:$0]  %s1947, 2048, %s1945, %s1932, 512, 512, 32
        $region32: #{gaussian_fourier_feature_transform.1} parent=27 // pred_fallthru
          _
      $region28: #{gaussian_fourier_feature_transform.1} parent=5 // pred_fallthru
        _
      %p1953 = scmp.le.s32.totalorder 2, %s11
      // Predicated region
      $region33: #{gaussian_fourier_feature_transform.1} parent=5 // pred_check
        %p1954 = pneg %p1953
      $region34: #{gaussian_fourier_feature_transform.1} parent=5 // pred_check_branch
        %1956 = sbr.rel (%p1954) target = $region36
      $region35: #{gaussian_fourier_feature_transform.1} parent=5 // pred_region
        %s1957 = ssub.s32 %s11, 2
        // Predicated region
        $region37: #{gaussian_fourier_feature_transform.1} parent=35 // pred_check
          %p1958 = pneg %p87
        $region38: #{gaussian_fourier_feature_transform.1} parent=35 // pred_check_branch
          %1960 = sbr.rel (%p1958) target = $region40
        $region39: #{gaussian_fourier_feature_transform.1} parent=35 // pred_region
          %s1961 = sand.u32 %s72, 1
          %s1962 = scalar_lea.sflag [#allocation3], %s1961
          %s1963 = sand.u32 %s72, 1
          %s1964 = smul.addr %s1963, 128
          %s1965 = scalar_lea.vmem [#allocation2], %s1964
          %1966 = dma.done %s1962, 2048
        $region40: #{gaussian_fourier_feature_transform.1} parent=35 // pred_fallthru
          _
      $region36: #{gaussian_fourier_feature_transform.1} parent=5 // pred_fallthru
        _
    $region6: #{gaussian_fourier_feature_transform.1} parent=1 // loop_footer
      %s15 = sadd.s32 1, %s11
    $region7: #{gaussian_fourier_feature_transform.1} parent=1 // loop_footer_branch
      %10 = sbr.rel target = $region3
    $region8: #{gaussian_fourier_feature_transform.1} parent=1 // loop_exit
      _
    %1967 = vsyncpa [#allocation3], 1
    %s1968 = scalar_lea.sflag [#allocation3], 1
    %1969 = vsyncpa %s1968, 1

</llo_original>
